<compile_context>
chip_gen: v7x
topology: tpu7x:2x2x1
jax: 0.10.0
libtpu: 0.0.40
codegen_flags: <defaults>
</compile_context>

<pallas_src>
import jax
import jax.numpy as jnp
from jax.experimental import pallas as pl
from jax.experimental.pallas import tpu as pltpu


# ---------------------------------------------------------------------------
# Helpers
# ---------------------------------------------------------------------------
def _round_up(v, m):
    return ((v + m - 1) // m) * m


def _pad2(x, rows, cols):
    return jnp.pad(x, ((0, rows - x.shape[0]), (0, cols - x.shape[1])))


def _full_spec(shape):
    # single-block spec: block == full (padded) array; grid is ()
    return pl.BlockSpec(shape, lambda: (0,) * len(shape))


# ---------------------------------------------------------------------------
# Fused Pallas kernel: conv1->relu->conv2->relu->conv3->mean_pool->linear
# ---------------------------------------------------------------------------
def _gnn_fused_kernel(x_ref, a_ref, p_ref,
                      w1_ref, b1_ref, w2_ref, b2_ref, w3_ref, b3_ref,
                      wl_ref, bl_ref, o_ref):
    a = a_ref[...]                                 # [N, N] bf16, resident for all 3 layers

    def graphconv(h_f32, w_ref, b_ref, apply_relu):
        h_bf = h_f32.astype(jnp.bfloat16)
        # neighbor aggregation on the MXU: bf16 inputs, f32 accumulation
        agg = jnp.dot(a, h_bf, preferred_element_type=jnp.float32)
        # merged self + neighbor transform: [h | agg] @ [W_self ; W_nbr] + b
        cat = jnp.concatenate([h_bf, agg.astype(jnp.bfloat16)], axis=-1)
        out = jnp.dot(cat, w_ref[...], preferred_element_type=jnp.float32) + b_ref[...]
        if apply_relu:
            out = jnp.maximum(out, 0.0)
        return out

    h = x_ref[...].astype(jnp.float32)
    h = graphconv(h, w1_ref, b1_ref, True)
    h = graphconv(h, w2_ref, b2_ref, True)
    h = graphconv(h, w3_ref, b3_ref, False)

    # global mean pool + linear head (tiny; kept in f32 for accuracy)
    pooled = jnp.dot(p_ref[...], h, preferred_element_type=jnp.float32)
    out = jnp.dot(pooled, wl_ref[...], preferred_element_type=jnp.float32) + bl_ref[...]
    # lane-dense (last dim multiple of 128) unmasked store
    o_ref[...] = out.astype(o_ref.dtype)


def gnn_fused_call(x_p, a_p, p_p, flat_params, g_pad, k_pad):
    operands = (x_p, a_p, p_p) + tuple(flat_params)
    total_bytes = sum(int(o.size) * o.dtype.itemsize for o in operands)
    total_bytes += g_pad * k_pad * 4  # output
    # double-buffered inputs + compute headroom; stays well inside v7x's scoped VMEM
    vmem_limit = int(min(3 * total_bytes + (4 << 20), 64 << 20))
    return pl.pallas_call(
        _gnn_fused_kernel,
        out_shape=jax.ShapeDtypeStruct((g_pad, k_pad), jnp.float32),
        in_specs=[_full_spec(o.shape) for o in operands],
        out_specs=_full_spec((g_pad, k_pad)),
        compiler_params=pltpu.CompilerParams(vmem_limit_bytes=vmem_limit),
    )(*operands)


# ---------------------------------------------------------------------------
# Parameters (plain JAX, host-side prep)
# ---------------------------------------------------------------------------
def init_params(key, input_channels, hidden_channels, n_classes):
    ks = jax.random.split(key, 8)
    s = 0.1
    return {
        "conv1": {"w_self": jax.random.normal(ks[0], (input_channels, hidden_channels), jnp.float32) * s,
                  "w_nbr":  jax.random.normal(ks[1], (input_channels, hidden_channels), jnp.float32) * s,
                  "b":      jnp.zeros((1, hidden_channels), jnp.float32)},
        "conv2": {"w_self": jax.random.normal(ks[2], (hidden_channels, hidden_channels), jnp.float32) * s,
                  "w_nbr":  jax.random.normal(ks[3], (hidden_channels, hidden_channels), jnp.float32) * s,
                  "b":      jnp.zeros((1, hidden_channels), jnp.float32)},
        "conv3": {"w_self": jax.random.normal(ks[4], (hidden_channels, hidden_channels), jnp.float32) * s,
                  "w_nbr":  jax.random.normal(ks[5], (hidden_channels, hidden_channels), jnp.float32) * s,
                  "b":      jnp.zeros((1, hidden_channels), jnp.float32)},
        "lin":   {"w": jax.random.normal(ks[6], (hidden_channels, n_classes), jnp.float32) * s,
                  "b": jax.random.normal(ks[7], (1, n_classes), jnp.float32) * s},
    }


def prepare_params(params, c_pad, h_pad, k_pad):
    """Zero-pad to 128-lane multiples and pre-stack [W_self ; W_nbr] in bf16."""
    def stack_conv(layer, in_pad):
        ws = _pad2(layer["w_self"], in_pad, h_pad)
        wn = _pad2(layer["w_nbr"], in_pad, h_pad)
        w = jnp.concatenate([ws, wn], axis=0).astype(jnp.bfloat16)     # [2*in_pad, h_pad]
        b = _pad2(layer["b"], 1, h_pad).astype(jnp.float32)
        return w, b

    w1, b1 = stack_conv(params["conv1"], c_pad)
    w2, b2 = stack_conv(params["conv2"], h_pad)
    w3, b3 = stack_conv(params["conv3"], h_pad)
    wl = _pad2(params["lin"]["w"], h_pad, k_pad).astype(jnp.float32)
    bl = _pad2(params["lin"]["b"], 1, k_pad).astype(jnp.float32)
    return (w1, b1, w2, b2, w3, b3, wl, bl)


def densify_graph(edge_index, batch, num_nodes, num_graphs, n_pad, g_pad):
    src, dst = edge_index[0], edge_index[1]
    # A[dst, src] += 1 per edge (GraphConv 'add'); exact in bf16 while counts <= 256
    a = jnp.zeros((n_pad, n_pad), jnp.float32).at[dst, src].add(1.0)
    a = a.astype(jnp.bfloat16)
    # P[g, n] = 1/|V_g| for node n in graph g (global_mean_pool); padded nodes -> 0
    batch_p = jnp.full((n_pad,), -1, jnp.int32).at[:num_nodes].set(batch)
    one_hot = (batch_p[None, :] == jnp.arange(g_pad, dtype=jnp.int32)[:, None]).astype(jnp.float32)
    counts = jnp.maximum(one_hot.sum(axis=1, keepdims=True), 1.0)
    p = one_hot / counts
    return a, p


def gnn_forward(params, x, edge_index, batch, num_graphs):
    num_nodes, in_ch = x.shape
    hidden = params["conv1"]["w_self"].shape[1]
    n_classes = params["lin"]["w"].shape[1]

    n_pad = _round_up(max(num_nodes, 8), 128)   # lane dim of A; sublane dim of x
    c_pad = _round_up(in_ch, 128)
    h_pad = _round_up(hidden, 128)
    k_pad = _round_up(n_classes, 128)
    g_pad = _round_up(max(num_graphs, 8), 8)

    a_p, p_p = densify_graph(edge_index, batch, num_nodes, num_graphs, n_pad, g_pad)
    x_p = _pad2(x.astype(jnp.float32), n_pad, c_pad)
    flat = prepare_params(params, c_pad, h_pad, k_pad)

    out_p = gnn_fused_call(x_p, a_p, p_p, flat, g_pad, k_pad)
    # dropout(p=0.5) is identity in eval mode; slice off padding
    return out_p[:num_graphs, :n_classes]


# ---------------------------------------------------------------------------
# Main
# ---------------------------------------------------------------------------
if __name__ == "__main__":
    input_channels, hidden_channels, n_classes = 8, 32, 4
    num_nodes, num_edges, num_graphs = 16, 48, 2

    key = jax.random.PRNGKey(0)
    k_param, k_x, k_src, k_dst = jax.random.split(key, 4)

    params = init_params(k_param, input_channels, hidden_channels, n_classes)

    x = jax.random.normal(k_x, (num_nodes, input_channels), jnp.float32)
    src = jax.random.randint(k_src, (num_edges,), 0, num_nodes, jnp.int32)
    dst = jax.random.randint(k_dst, (num_edges,), 0, num_nodes, jnp.int32)
    edge_index = jnp.stack([src, dst], axis=0)            # [2, num_edges]
    batch = jnp.concatenate([jnp.zeros(num_nodes // 2, jnp.int32),
                             jnp.ones(num_nodes - num_nodes // 2, jnp.int32)])

    out = gnn_forward(params, x, edge_index, batch, num_graphs)
    jax.block_until_ready(out)
    assert out.shape == (num_graphs, n_classes)
    print("KERNEL_OK")
</pallas_src>

<mosaic_0001>
module attributes {stable_mosaic.version = 11 : i64} {
  func.func @_gnn_fused_kernel(%arg0: memref<128x128xf32, #tpu.memory_space<vmem>>, %arg1: memref<128x128xbf16, #tpu.memory_space<vmem>>, %arg2: memref<8x128xf32, #tpu.memory_space<vmem>>, %arg3: memref<256x128xbf16, #tpu.memory_space<vmem>>, %arg4: memref<1x128xf32, #tpu.memory_space<vmem>>, %arg5: memref<256x128xbf16, #tpu.memory_space<vmem>>, %arg6: memref<1x128xf32, #tpu.memory_space<vmem>>, %arg7: memref<256x128xbf16, #tpu.memory_space<vmem>>, %arg8: memref<1x128xf32, #tpu.memory_space<vmem>>, %arg9: memref<128x128xf32, #tpu.memory_space<vmem>>, %arg10: memref<1x128xf32, #tpu.memory_space<vmem>>, %arg11: memref<8x128xf32, #tpu.memory_space<vmem>>) attributes {dimension_semantics = [], scalar_prefetch = 0 : i64, scratch_operands = 0 : i64, tpu.core_type = #tpu.core_type<tc>} {
    %c0 = arith.constant 0 : index
    %c0_0 = arith.constant 0 : index
    %0 = vector.load %arg1[%c0, %c0_0] : memref<128x128xbf16, #tpu.memory_space<vmem>>, vector<128x128xbf16>
    %c0_1 = arith.constant 0 : index
    %c0_2 = arith.constant 0 : index
    %1 = vector.load %arg0[%c0_1, %c0_2] : memref<128x128xf32, #tpu.memory_space<vmem>>, vector<128x128xf32>
    %2 = arith.truncf %1 : vector<128x128xf32> to vector<128x128xbf16>
    %cst = arith.constant dense<0.000000e+00> : vector<128x128xf32>
    %3 = tpu.matmul %0, %2, %cst {dimension_numbers = #tpu.dot_dimension_numbers<[1], [0], [0], [1], [0, 0, 1, 1], [], []>} : vector<128x128xbf16>, vector<128x128xbf16>, vector<128x128xf32> -> vector<128x128xf32>
    %4 = arith.truncf %3 : vector<128x128xf32> to vector<128x128xbf16>
    %5 = tpu.concatenate %2, %4 in 1 : vector<128x128xbf16>, vector<128x128xbf16> -> vector<128x256xbf16>
    %c0_3 = arith.constant 0 : index
    %c0_4 = arith.constant 0 : index
    %6 = vector.load %arg3[%c0_3, %c0_4] : memref<256x128xbf16, #tpu.memory_space<vmem>>, vector<256x128xbf16>
    %cst_5 = arith.constant dense<0.000000e+00> : vector<128x128xf32>
    %7 = tpu.matmul %5, %6, %cst_5 {dimension_numbers = #tpu.dot_dimension_numbers<[1], [0], [0], [1], [0, 0, 1, 1], [], []>} : vector<128x256xbf16>, vector<256x128xbf16>, vector<128x128xf32> -> vector<128x128xf32>
    %c0_6 = arith.constant 0 : index
    %c0_7 = arith.constant 0 : index
    %8 = vector.load %arg4[%c0_6, %c0_7] : memref<1x128xf32, #tpu.memory_space<vmem>>, vector<1x128xf32>
    %9 = vector.broadcast %8 : vector<1x128xf32> to vector<128x128xf32>
    %10 = arith.addf %7, %9 : vector<128x128xf32>
    %cst_8 = arith.constant 0.000000e+00 : f32
    %11 = vector.broadcast %cst_8 : f32 to vector<128x128xf32>
    %12 = arith.maximumf %10, %11 : vector<128x128xf32>
    %13 = arith.truncf %12 : vector<128x128xf32> to vector<128x128xbf16>
    %cst_9 = arith.constant dense<0.000000e+00> : vector<128x128xf32>
    %14 = tpu.matmul %0, %13, %cst_9 {dimension_numbers = #tpu.dot_dimension_numbers<[1], [0], [0], [1], [0, 0, 1, 1], [], []>} : vector<128x128xbf16>, vector<128x128xbf16>, vector<128x128xf32> -> vector<128x128xf32>
    %15 = arith.truncf %14 : vector<128x128xf32> to vector<128x128xbf16>
    %16 = tpu.concatenate %13, %15 in 1 : vector<128x128xbf16>, vector<128x128xbf16> -> vector<128x256xbf16>
    %c0_10 = arith.constant 0 : index
    %c0_11 = arith.constant 0 : index
    %17 = vector.load %arg5[%c0_10, %c0_11] : memref<256x128xbf16, #tpu.memory_space<vmem>>, vector<256x128xbf16>
    %cst_12 = arith.constant dense<0.000000e+00> : vector<128x128xf32>
    %18 = tpu.matmul %16, %17, %cst_12 {dimension_numbers = #tpu.dot_dimension_numbers<[1], [0], [0], [1], [0, 0, 1, 1], [], []>} : vector<128x256xbf16>, vector<256x128xbf16>, vector<128x128xf32> -> vector<128x128xf32>
    %c0_13 = arith.constant 0 : index
    %c0_14 = arith.constant 0 : index
    %19 = vector.load %arg6[%c0_13, %c0_14] : memref<1x128xf32, #tpu.memory_space<vmem>>, vector<1x128xf32>
    %20 = vector.broadcast %19 : vector<1x128xf32> to vector<128x128xf32>
    %21 = arith.addf %18, %20 : vector<128x128xf32>
    %cst_15 = arith.constant 0.000000e+00 : f32
    %22 = vector.broadcast %cst_15 : f32 to vector<128x128xf32>
    %23 = arith.maximumf %21, %22 : vector<128x128xf32>
    %24 = arith.truncf %23 : vector<128x128xf32> to vector<128x128xbf16>
    %cst_16 = arith.constant dense<0.000000e+00> : vector<128x128xf32>
    %25 = tpu.matmul %0, %24, %cst_16 {dimension_numbers = #tpu.dot_dimension_numbers<[1], [0], [0], [1], [0, 0, 1, 1], [], []>} : vector<128x128xbf16>, vector<128x128xbf16>, vector<128x128xf32> -> vector<128x128xf32>
    %26 = arith.truncf %25 : vector<128x128xf32> to vector<128x128xbf16>
    %27 = tpu.concatenate %24, %26 in 1 : vector<128x128xbf16>, vector<128x128xbf16> -> vector<128x256xbf16>
    %c0_17 = arith.constant 0 : index
    %c0_18 = arith.constant 0 : index
    %28 = vector.load %arg7[%c0_17, %c0_18] : memref<256x128xbf16, #tpu.memory_space<vmem>>, vector<256x128xbf16>
    %cst_19 = arith.constant dense<0.000000e+00> : vector<128x128xf32>
    %29 = tpu.matmul %27, %28, %cst_19 {dimension_numbers = #tpu.dot_dimension_numbers<[1], [0], [0], [1], [0, 0, 1, 1], [], []>} : vector<128x256xbf16>, vector<256x128xbf16>, vector<128x128xf32> -> vector<128x128xf32>
    %c0_20 = arith.constant 0 : index
    %c0_21 = arith.constant 0 : index
    %30 = vector.load %arg8[%c0_20, %c0_21] : memref<1x128xf32, #tpu.memory_space<vmem>>, vector<1x128xf32>
    %31 = vector.broadcast %30 : vector<1x128xf32> to vector<128x128xf32>
    %32 = arith.addf %29, %31 : vector<128x128xf32>
    %c0_22 = arith.constant 0 : index
    %c0_23 = arith.constant 0 : index
    %33 = vector.load %arg2[%c0_22, %c0_23] : memref<8x128xf32, #tpu.memory_space<vmem>>, vector<8x128xf32>
    %cst_24 = arith.constant dense<0.000000e+00> : vector<8x128xf32>
    %34 = tpu.matmul %33, %32, %cst_24 {dimension_numbers = #tpu.dot_dimension_numbers<[1], [0], [0], [1], [0, 0, 1, 1], [], []>} : vector<8x128xf32>, vector<128x128xf32>, vector<8x128xf32> -> vector<8x128xf32>
    %c0_25 = arith.constant 0 : index
    %c0_26 = arith.constant 0 : index
    %35 = vector.load %arg9[%c0_25, %c0_26] : memref<128x128xf32, #tpu.memory_space<vmem>>, vector<128x128xf32>
    %cst_27 = arith.constant dense<0.000000e+00> : vector<8x128xf32>
    %36 = tpu.matmul %34, %35, %cst_27 {dimension_numbers = #tpu.dot_dimension_numbers<[1], [0], [0], [1], [0, 0, 1, 1], [], []>} : vector<8x128xf32>, vector<128x128xf32>, vector<8x128xf32> -> vector<8x128xf32>
    %c0_28 = arith.constant 0 : index
    %c0_29 = arith.constant 0 : index
    %37 = vector.load %arg10[%c0_28, %c0_29] : memref<1x128xf32, #tpu.memory_space<vmem>>, vector<1x128xf32>
    %38 = vector.broadcast %37 : vector<1x128xf32> to vector<8x128xf32>
    %39 = arith.addf %36, %38 : vector<8x128xf32>
    %c0_30 = arith.constant 0 : index
    %c0_31 = arith.constant 0 : index
    %40 = vector.load %arg11[%c0_30, %c0_31] : memref<8x128xf32, #tpu.memory_space<vmem>>, vector<8x128xf32>
    tpu.vector_store %arg11[%c0_30, %c0_31], %39 {strides = array<i32>} : memref<8x128xf32, #tpu.memory_space<vmem>>, vector<8x128xf32>,
    return
  }
}

</mosaic_0001>

<llo_original>
// kernel: tpu_custom_call.1
$region0: #{tpu_custom_call.1}
  #allocation0 [shape = 'u32[]', space=smem, size = 0x4, offset = 0x4, fixed_abs, tag = 'smem constant byte address 0x4 - core index']
  #allocation1 [shape = 'u32[144,128]{1,0:T(1,128)}', space=vmem, size = 0x12000, scoped, tag = 'internal scratch']
  %s0 = inlined_call_operand.hbm [shape: f32[128,128], index: 0, kind: input, shape index: {}]
  %s1 = inlined_call_operand.hbm [shape: bf16[128,128], index: 1, kind: input, shape index: {}]
  %s2 = inlined_call_operand.hbm [shape: f32[8,128], index: 2, kind: input, shape index: {}]
  %s3 = inlined_call_operand.hbm [shape: bf16[256,128], index: 3, kind: input, shape index: {}]
  %s4 = inlined_call_operand.vmem [shape: f32[1,128], index: 4, kind: input, shape index: {}]
  %s5 = inlined_call_operand.hbm [shape: bf16[256,128], index: 5, kind: input, shape index: {}]
  %s6 = inlined_call_operand.vmem [shape: f32[1,128], index: 6, kind: input, shape index: {}]
  %s7 = inlined_call_operand.hbm [shape: bf16[256,128], index: 7, kind: input, shape index: {}]
  %s8 = inlined_call_operand.vmem [shape: f32[1,128], index: 8, kind: input, shape index: {}]
  %s9 = inlined_call_operand.hbm [shape: f32[128,128], index: 9, kind: input, shape index: {}]
  %s10 = inlined_call_operand.vmem [shape: f32[1,128], index: 10, kind: input, shape index: {}]
  %s11 = inlined_call_operand.hbm [shape: f32[8,128], index: 11, kind: output, shape index: {}]
  %s12 = sld [smem:[#allocation0]]
  $region82: #{tpu_custom_call.1} parent=0
    _
  %s14 = ssub.s32 1, %s12
  %s15 = scalar_select 0, %s14, %s12
  $region1: #{tpu_custom_call.1} parent=0
    #allocation2 [shape = 'u8[65536]{0}', space=vmem, size = 0x10000, scoped, tag = 'input window, operand 0, single buffered']
    #allocation3 [shape = 's32[1]{0}', space=sflag, size = 0x4, scoped, tag = 'scoped memory for tpu_custom_call.1']
    #allocation4 [shape = 's32[1]{0}', space=sflag, size = 0x4, scoped, tag = 'scoped memory for tpu_custom_call.1']
    #allocation5 [shape = 'u8[32768]{0}', space=vmem, size = 0x8000, scoped, tag = 'input window, operand 1, single buffered']
    #allocation6 [shape = 's32[1]{0}', space=sflag, size = 0x4, scoped, tag = 'scoped memory for tpu_custom_call.1']
    #allocation7 [shape = 'u8[4096]{0}', space=vmem, size = 0x1000, scoped, tag = 'input window, operand 2, single buffered']
    #allocation8 [shape = 'u8[65536]{0}', space=vmem, size = 0x10000, scoped, tag = 'input window, operand 3, single buffered']
    #allocation9 [shape = 's32[1]{0}', space=sflag, size = 0x4, scoped, tag = 'scoped memory for tpu_custom_call.1']
    #allocation10 [shape = 'u8[65536]{0}', space=vmem, size = 0x10000, scoped, tag = 'input window, operand 5, single buffered']
    #allocation11 [shape = 'u8[65536]{0}', space=vmem, size = 0x10000, scoped, tag = 'input window, operand 7, single buffered']
    #allocation12 [shape = 's32[1]{0}', space=sflag, size = 0x4, scoped, tag = 'scoped memory for tpu_custom_call.1']
    #allocation13 [shape = 'u8[65536]{0}', space=vmem, size = 0x10000, scoped, tag = 'input window, operand 9, single buffered']
    #allocation14 [shape = 'u8[4096]{0}', space=vmem, size = 0x1000, scoped, tag = 'output window, operand 0, single buffered']
    %16 = vsyncpa [#allocation3], 0
    %17 = vsyncpa [#allocation6], 0
    %18 = vsyncpa [#allocation9], 0
    %19 = vsyncpa [#allocation12], 0
    %20 = vsyncpa [#allocation4], 0
    // Predicated region
    $region2: #{tpu_custom_call.1} parent=1 // pred_check
      _
    $region3: #{tpu_custom_call.1} parent=1 // pred_check_branch
      %22 = sbr.rel (0) target = $region5
    $region4: #{tpu_custom_call.1} parent=1 // pred_region
      %s24 = ssub.s32 2048, 2048
      %25 = vsyncadd [#allocation3], %s24
      %s26 = sshll.u32 [#allocation2], 4
      %s27 = int_to_ptr.vmem [resolvable:$true] %s26
      %32 = dma.hbm_to_vmem [thread:$0]  %s0, 2048, %s27, [#allocation3], 128, 128, 8
    $region5: #{tpu_custom_call.1} parent=1 // pred_fallthru
      _
    // Predicated region
    $region6: #{tpu_custom_call.1} parent=1 // pred_check
      _
    $region7: #{tpu_custom_call.1} parent=1 // pred_check_branch
      %34 = sbr.rel (0) target = $region9
    $region8: #{tpu_custom_call.1} parent=1 // pred_region
      %s36 = ssub.s32 1024, 1024
      %37 = vsyncadd [#allocation6], %s36
      %s38 = sshll.u32 [#allocation5], 4
      %s39 = int_to_ptr.vmem [resolvable:$true] %s38
      %44 = dma.hbm_to_vmem [thread:$0]  %s1, 1024, %s39, [#allocation6], 64, 64, 4
    $region9: #{tpu_custom_call.1} parent=1 // pred_fallthru
      _
    // Predicated region
    $region10: #{tpu_custom_call.1} parent=1 // pred_check
      _
    $region11: #{tpu_custom_call.1} parent=1 // pred_check_branch
      %46 = sbr.rel (0) target = $region13
    $region12: #{tpu_custom_call.1} parent=1 // pred_region
      %s48 = ssub.s32 128, 128
      %49 = vsyncadd [#allocation6], %s48
      %s51 = sshll.u32 [#allocation7], 4
      %s52 = int_to_ptr.vmem [resolvable:$true] %s51
      %54 = dma.hbm_to_vmem [thread:$0]  %s2, 128, %s52, [#allocation6]
    $region13: #{tpu_custom_call.1} parent=1 // pred_fallthru
      _
    // Predicated region
    $region14: #{tpu_custom_call.1} parent=1 // pred_check
      _
    $region15: #{tpu_custom_call.1} parent=1 // pred_check_branch
      %56 = sbr.rel (0) target = $region17
    $region16: #{tpu_custom_call.1} parent=1 // pred_region
      %s58 = ssub.s32 2048, 2048
      %59 = vsyncadd [#allocation9], %s58
      %s60 = sshll.u32 [#allocation8], 4
      %s61 = int_to_ptr.vmem [resolvable:$true] %s60
      %66 = dma.hbm_to_vmem [thread:$0]  %s3, 2048, %s61, [#allocation9], 64, 64, 4
    $region17: #{tpu_custom_call.1} parent=1 // pred_fallthru
      _
    // Predicated region
    $region18: #{tpu_custom_call.1} parent=1 // pred_check
      _
    $region19: #{tpu_custom_call.1} parent=1 // pred_check_branch
      %68 = sbr.rel (0) target = $region21
    $region20: #{tpu_custom_call.1} parent=1 // pred_region
      _
    $region21: #{tpu_custom_call.1} parent=1 // pred_fallthru
      _
    // Predicated region
    $region22: #{tpu_custom_call.1} parent=1 // pred_check
      _
    $region23: #{tpu_custom_call.1} parent=1 // pred_check_branch
      %70 = sbr.rel (0) target = $region25
    $region24: #{tpu_custom_call.1} parent=1 // pred_region
      %s72 = ssub.s32 2048, 2048
      %73 = vsyncadd [#allocation9], %s72
      %s74 = sshll.u32 [#allocation10], 4
      %s75 = int_to_ptr.vmem [resolvable:$true] %s74
      %80 = dma.hbm_to_vmem [thread:$0]  %s5, 2048, %s75, [#allocation9], 64, 64, 4
    $region25: #{tpu_custom_call.1} parent=1 // pred_fallthru
      _
    // Predicated region
    $region26: #{tpu_custom_call.1} parent=1 // pred_check
      _
    $region27: #{tpu_custom_call.1} parent=1 // pred_check_branch
      %82 = sbr.rel (0) target = $region29
    $region28: #{tpu_custom_call.1} parent=1 // pred_region
      _
    $region29: #{tpu_custom_call.1} parent=1 // pred_fallthru
      _
    // Predicated region
    $region30: #{tpu_custom_call.1} parent=1 // pred_check
      _
    $region31: #{tpu_custom_call.1} parent=1 // pred_check_branch
      %84 = sbr.rel (0) target = $region33
    $region32: #{tpu_custom_call.1} parent=1 // pred_region
      %s86 = ssub.s32 2048, 2048
      %87 = vsyncadd [#allocation12], %s86
      %s88 = sshll.u32 [#allocation11], 4
      %s89 = int_to_ptr.vmem [resolvable:$true] %s88
      %94 = dma.hbm_to_vmem [thread:$0]  %s7, 2048, %s89, [#allocation12], 64, 64, 4
    $region33: #{tpu_custom_call.1} parent=1 // pred_fallthru
      _
    // Predicated region
    $region34: #{tpu_custom_call.1} parent=1 // pred_check
      _
    $region35: #{tpu_custom_call.1} parent=1 // pred_check_branch
      %96 = sbr.rel (0) target = $region37
    $region36: #{tpu_custom_call.1} parent=1 // pred_region
      _
    $region37: #{tpu_custom_call.1} parent=1 // pred_fallthru
      _
    // Predicated region
    $region38: #{tpu_custom_call.1} parent=1 // pred_check
      _
    $region39: #{tpu_custom_call.1} parent=1 // pred_check_branch
      %98 = sbr.rel (0) target = $region41
    $region40: #{tpu_custom_call.1} parent=1 // pred_region
      %s100 = ssub.s32 2048, 2048
      %101 = vsyncadd [#allocation12], %s100
      %s102 = sshll.u32 [#allocation13], 4
      %s103 = int_to_ptr.vmem [resolvable:$true] %s102
      %108 = dma.hbm_to_vmem [thread:$0]  %s9, 2048, %s103, [#allocation12], 128, 128, 8
    $region41: #{tpu_custom_call.1} parent=1 // pred_fallthru
      _
    // Predicated region
    $region42: #{tpu_custom_call.1} parent=1 // pred_check
      _
    $region43: #{tpu_custom_call.1} parent=1 // pred_check_branch
      %110 = sbr.rel (0) target = $region45
    $region44: #{tpu_custom_call.1} parent=1 // pred_region
      _
    $region45: #{tpu_custom_call.1} parent=1 // pred_fallthru
      _
    // Predicated region
    $region46: #{tpu_custom_call.1} parent=1 // pred_check
      _
    $region47: #{tpu_custom_call.1} parent=1 // pred_check_branch
      %112 = sbr.rel (0) target = $region49
    $region48: #{tpu_custom_call.1} parent=1 // pred_region
      %113 = dma.done [#allocation3], 2048
    $region49: #{tpu_custom_call.1} parent=1 // pred_fallthru
      _
    // Predicated region
    $region50: #{tpu_custom_call.1} parent=1 // pred_check
      _
    $region51: #{tpu_custom_call.1} parent=1 // pred_check_branch
      %115 = sbr.rel (0) target = $region53
    $region52: #{tpu_custom_call.1} parent=1 // pred_region
      %116 = dma.done [#allocation6], 1024
    $region53: #{tpu_custom_call.1} parent=1 // pred_fallthru
      _
    // Predicated region
    $region54: #{tpu_custom_call.1} parent=1 // pred_check
      _
    $region55: #{tpu_custom_call.1} parent=1 // pred_check_branch
      %118 = sbr.rel (0) target = $region57
    $region56: #{tpu_custom_call.1} parent=1 // pred_region
      %119 = dma.done [#allocation6], 128
    $region57: #{tpu_custom_call.1} parent=1 // pred_fallthru
      _
    // Predicated region
    $region58: #{tpu_custom_call.1} parent=1 // pred_check
      _
    $region59: #{tpu_custom_call.1} parent=1 // pred_check_branch
      %121 = sbr.rel (0) target = $region61
    $region60: #{tpu_custom_call.1} parent=1 // pred_region
      %122 = dma.done [#allocation9], 2048
    $region61: #{tpu_custom_call.1} parent=1 // pred_fallthru
      _
    // Predicated region
    $region62: #{tpu_custom_call.1} parent=1 // pred_check
      _
    $region63: #{tpu_custom_call.1} parent=1 // pred_check_branch
      %124 = sbr.rel (0) target = $region65
    $region64: #{tpu_custom_call.1} parent=1 // pred_region
      %125 = dma.done [#allocation9], 2048
    $region65: #{tpu_custom_call.1} parent=1 // pred_fallthru
      _
    // Predicated region
    $region66: #{tpu_custom_call.1} parent=1 // pred_check
      _
    $region67: #{tpu_custom_call.1} parent=1 // pred_check_branch
      %127 = sbr.rel (0) target = $region69
    $region68: #{tpu_custom_call.1} parent=1 // pred_region
      %128 = dma.done [#allocation12], 2048
    $region69: #{tpu_custom_call.1} parent=1 // pred_fallthru
      _
    // Predicated region
    $region70: #{tpu_custom_call.1} parent=1 // pred_check
      _
    $region71: #{tpu_custom_call.1} parent=1 // pred_check_branch
      %130 = sbr.rel (0) target = $region73
    $region72: #{tpu_custom_call.1} parent=1 // pred_region
      %131 = dma.done [#allocation12], 2048
    $region73: #{tpu_custom_call.1} parent=1 // pred_fallthru
      _
    %v133 = vld [vmem:[#allocation5] sm:$0xf]
    %v134 = vld [vmem:[#allocation5 + $0x4] sm:$0xf]
    %v135 = vld [vmem:[#allocation5 + $0x8] sm:$0xf]
    %v136 = vld [vmem:[#allocation5 + $0xc] sm:$0xf]
    %v137 = vld [vmem:[#allocation5 + $0x10] sm:$0xf]
    %v138 = vld [vmem:[#allocation5 + $0x14] sm:$0xf]
    %v139 = vld [vmem:[#allocation5 + $0x18] sm:$0xf]
    %v140 = vld [vmem:[#allocation5 + $0x1c] sm:$0xf]
    %v141 = vld [vmem:[#allocation5 + $0x20] sm:$0xf]
    %v142 = vld [vmem:[#allocation5 + $0x24] sm:$0xf]
    %v143 = vld [vmem:[#allocation5 + $0x28] sm:$0xf]
    %v144 = vld [vmem:[#allocation5 + $0x2c] sm:$0xf]
    %v145 = vld [vmem:[#allocation5 + $0x30] sm:$0xf]
    %v146 = vld [vmem:[#allocation5 + $0x34] sm:$0xf]
    %v147 = vld [vmem:[#allocation5 + $0x38] sm:$0xf]
    %v148 = vld [vmem:[#allocation5 + $0x3c] sm:$0xf]
    %v149 = vld [vmem:[#allocation2] sm:$0xff]
    %v150 = vld [vmem:[#allocation2 + $0x8] sm:$0xff]
    %v151 = vld [vmem:[#allocation2 + $0x10] sm:$0xff]
    %v152 = vld [vmem:[#allocation2 + $0x18] sm:$0xff]
    %v153 = vld [vmem:[#allocation2 + $0x20] sm:$0xff]
    %v154 = vld [vmem:[#allocation2 + $0x28] sm:$0xff]
    %v155 = vld [vmem:[#allocation2 + $0x30] sm:$0xff]
    %v156 = vld [vmem:[#allocation2 + $0x38] sm:$0xff]
    %v157 = vld [vmem:[#allocation2 + $0x40] sm:$0xff]
    %v158 = vld [vmem:[#allocation2 + $0x48] sm:$0xff]
    %v159 = vld [vmem:[#allocation2 + $0x50] sm:$0xff]
    %v160 = vld [vmem:[#allocation2 + $0x58] sm:$0xff]
    %v161 = vld [vmem:[#allocation2 + $0x60] sm:$0xff]
    %v162 = vld [vmem:[#allocation2 + $0x68] sm:$0xff]
    %v163 = vld [vmem:[#allocation2 + $0x70] sm:$0xff]
    %v164 = vld [vmem:[#allocation2 + $0x78] sm:$0xff]
    %v165 = vpack.c.bf16 %v150, %v149
    %v166 = vpack.c.bf16 %v152, %v151
    %v167 = vpack.c.bf16 %v154, %v153
    %v168 = vpack.c.bf16 %v156, %v155
    %v169 = vpack.c.bf16 %v158, %v157
    %v170 = vpack.c.bf16 %v160, %v159
    %v171 = vpack.c.bf16 %v162, %v161
    %v172 = vpack.c.bf16 %v164, %v163
    %v189 = vunpack.c.l.b16 %v133
    %v190 = vunpack.c.l.b16 %v134
    %v191 = vunpack.c.l.b16 %v135
    %v192 = vunpack.c.l.b16 %v136
    %v193 = vunpack.c.l.b16 %v137
    %v194 = vunpack.c.l.b16 %v138
    %v195 = vunpack.c.l.b16 %v139
    %v196 = vunpack.c.l.b16 %v140
    %v197 = vunpack.c.l.b16 %v141
    %v198 = vunpack.c.l.b16 %v142
    %v199 = vunpack.c.l.b16 %v143
    %v200 = vunpack.c.l.b16 %v144
    %v201 = vunpack.c.l.b16 %v145
    %v202 = vunpack.c.l.b16 %v146
    %v203 = vunpack.c.l.b16 %v147
    %v204 = vunpack.c.l.b16 %v148
    %v205 = vpack.c.b16 %v190, %v189
    %v206 = vpack.c.b16 %v192, %v191
    %v207 = vpack.c.b16 %v194, %v193
    %v208 = vpack.c.b16 %v196, %v195
    %v209 = vpack.c.b16 %v198, %v197
    %v210 = vpack.c.b16 %v200, %v199
    %v211 = vpack.c.b16 %v202, %v201
    %v212 = vpack.c.b16 %v204, %v203
    %221 = vmatprep.subr.bf16.mxu0 0
    %222 = vmatpush1.bf16.msra.mxu0 %v165
    %223 = vmatprep.subr.bf16.mxu0 0
    %224 = vmatpush1.bf16.msra.mxu0 %v166
    %225 = vmatprep.subr.bf16.mxu0 0
    %226 = vmatpush1.bf16.msra.mxu0 %v167
    %227 = vmatprep.subr.bf16.mxu0 0
    %228 = vmatpush1.bf16.msra.mxu0 %v168
    %229 = vmatprep.subr.bf16.mxu0 0
    %230 = vmatpush1.bf16.msra.mxu0 %v169
    %231 = vmatprep.subr.bf16.mxu0 0
    %232 = vmatpush1.bf16.msra.mxu0 %v170
    %233 = vmatprep.subr.bf16.mxu0 0
    %234 = vmatpush1.bf16.msra.mxu0 %v171
    %235 = vmatprep.subr.bf16.mxu0 0
    %236 = vmatpush1.bf16.msra.mxu0 %v172
    %237 = vmatprep.subr.bf16.mxu0 0
    %238 = vmatpush1.bf16.msra.mxu0 0
    %239 = vmatprep.subr.bf16.mxu0 0
    %240 = vmatpush1.bf16.msra.mxu0 0
    %241 = vmatprep.subr.bf16.mxu0 0
    %242 = vmatpush1.bf16.msra.mxu0 0
    %243 = vmatprep.subr.bf16.mxu0 0
    %244 = vmatpush1.bf16.msra.mxu0 0
    %245 = vmatprep.subr.bf16.mxu0 0
    %246 = vmatpush1.bf16.msra.mxu0 0
    %247 = vmatprep.subr.bf16.mxu0 0
    %248 = vmatpush1.bf16.msra.mxu0 0
    %249 = vmatprep.subr.bf16.mxu0 0
    %250 = vmatpush1.bf16.msra.mxu0 0
    %251 = vmatprep.subr.bf16.mxu0 0
    %252 = vmatpush1.bf16.msra.mxu0 0
    %253 = vmatprep.mubr.bf16.mxu0 0
    %254 = vmatmul.mubr.bf16.gmra.mrb[0].mxu0 %v205
    %v255 = vpop.f32.mrb[0].mxu0
    %v256 = vadd.f32 0.0, %v255
    %v257 = vpop.f32.mrb[0].mxu0
    %v258 = vpop.f32.mrb[0].mxu0
    %v259 = vadd.f32 0.0, %v258
    %v260 = vpop.f32.mrb[0].mxu0
    %261 = vmatprep.mubr.bf16.mxu0 0
    %262 = vmatmul.mubr.bf16.gmra.mrb[0].mxu0 %v206
    %v263 = vpop.f32.mrb[0].mxu0
    %v264 = vadd.f32 0.0, %v263
    %v265 = vpop.f32.mrb[0].mxu0
    %v266 = vpop.f32.mrb[0].mxu0
    %v267 = vadd.f32 0.0, %v266
    %v268 = vpop.f32.mrb[0].mxu0
    %269 = vmatprep.mubr.bf16.mxu0 0
    %270 = vmatmul.mubr.bf16.gmra.mrb[0].mxu0 %v207
    %v271 = vpop.f32.mrb[0].mxu0
    %v272 = vadd.f32 0.0, %v271
    %v273 = vpop.f32.mrb[0].mxu0
    %v274 = vpop.f32.mrb[0].mxu0
    %v275 = vadd.f32 0.0, %v274
    %v276 = vpop.f32.mrb[0].mxu0
    %277 = vmatprep.mubr.bf16.mxu0 0
    %278 = vmatmul.mubr.bf16.gmra.mrb[0].mxu0 %v208
    %v279 = vpop.f32.mrb[0].mxu0
    %v280 = vadd.f32 0.0, %v279
    %v281 = vpop.f32.mrb[0].mxu0
    %v282 = vpop.f32.mrb[0].mxu0
    %v283 = vadd.f32 0.0, %v282
    %v284 = vpop.f32.mrb[0].mxu0
    %285 = vmatprep.mubr.bf16.mxu0 0
    %286 = vmatmul.mubr.bf16.gmra.mrb[0].mxu0 %v209
    %v287 = vpop.f32.mrb[0].mxu0
    %v288 = vadd.f32 0.0, %v287
    %v289 = vpop.f32.mrb[0].mxu0
    %v290 = vpop.f32.mrb[0].mxu0
    %v291 = vadd.f32 0.0, %v290
    %v292 = vpop.f32.mrb[0].mxu0
    %293 = vmatprep.mubr.bf16.mxu0 0
    %294 = vmatmul.mubr.bf16.gmra.mrb[0].mxu0 %v210
    %v295 = vpop.f32.mrb[0].mxu0
    %v296 = vadd.f32 0.0, %v295
    %v297 = vpop.f32.mrb[0].mxu0
    %v298 = vpop.f32.mrb[0].mxu0
    %v299 = vadd.f32 0.0, %v298
    %v300 = vpop.f32.mrb[0].mxu0
    %301 = vmatprep.mubr.bf16.mxu0 0
    %302 = vmatmul.mubr.bf16.gmra.mrb[0].mxu0 %v211
    %v303 = vpop.f32.mrb[0].mxu0
    %v304 = vadd.f32 0.0, %v303
    %v305 = vpop.f32.mrb[0].mxu0
    %v306 = vpop.f32.mrb[0].mxu0
    %v307 = vadd.f32 0.0, %v306
    %v308 = vpop.f32.mrb[0].mxu0
    %309 = vmatprep.mubr.bf16.mxu0 0
    %310 = vmatmul.mubr.bf16.gmra.mrb[0].mxu0 %v212
    %v311 = vpop.f32.mrb[0].mxu0
    %v312 = vadd.f32 0.0, %v311
    %v313 = vpop.f32.mrb[0].mxu0
    %v314 = vpop.f32.mrb[0].mxu0
    %v315 = vadd.f32 0.0, %v314
    %v316 = vpop.f32.mrb[0].mxu0
    %317 = vdwg.mxu0
    %v318 = vpack.c.bf16 %v259, %v256
    %v319 = vpack.c.bf16 %v267, %v264
    %v320 = vpack.c.bf16 %v275, %v272
    %v321 = vpack.c.bf16 %v283, %v280
    %v322 = vpack.c.bf16 %v291, %v288
    %v323 = vpack.c.bf16 %v299, %v296
    %v324 = vpack.c.bf16 %v307, %v304
    %v325 = vpack.c.bf16 %v315, %v312
    %v326 = vld [vmem:[#allocation8] sm:$0xf]
    %v327 = vld [vmem:[#allocation8 + $0x4] sm:$0xf]
    %v328 = vld [vmem:[#allocation8 + $0x8] sm:$0xf]
    %v329 = vld [vmem:[#allocation8 + $0xc] sm:$0xf]
    %v330 = vld [vmem:[#allocation8 + $0x10] sm:$0xf]
    %v331 = vld [vmem:[#allocation8 + $0x14] sm:$0xf]
    %v332 = vld [vmem:[#allocation8 + $0x18] sm:$0xf]
    %v333 = vld [vmem:[#allocation8 + $0x1c] sm:$0xf]
    %v334 = vld [vmem:[#allocation8 + $0x20] sm:$0xf]
    %v335 = vld [vmem:[#allocation8 + $0x24] sm:$0xf]
    %v336 = vld [vmem:[#allocation8 + $0x28] sm:$0xf]
    %v337 = vld [vmem:[#allocation8 + $0x2c] sm:$0xf]
    %v338 = vld [vmem:[#allocation8 + $0x30] sm:$0xf]
    %v339 = vld [vmem:[#allocation8 + $0x34] sm:$0xf]
    %v340 = vld [vmem:[#allocation8 + $0x38] sm:$0xf]
    %v341 = vld [vmem:[#allocation8 + $0x3c] sm:$0xf]
    %v342 = vld [vmem:[#allocation8 + $0x40] sm:$0xf]
    %v343 = vld [vmem:[#allocation8 + $0x44] sm:$0xf]
    %v344 = vld [vmem:[#allocation8 + $0x48] sm:$0xf]
    %v345 = vld [vmem:[#allocation8 + $0x4c] sm:$0xf]
    %v346 = vld [vmem:[#allocation8 + $0x50] sm:$0xf]
    %v347 = vld [vmem:[#allocation8 + $0x54] sm:$0xf]
    %v348 = vld [vmem:[#allocation8 + $0x58] sm:$0xf]
    %v349 = vld [vmem:[#allocation8 + $0x5c] sm:$0xf]
    %v350 = vld [vmem:[#allocation8 + $0x60] sm:$0xf]
    %v351 = vld [vmem:[#allocation8 + $0x64] sm:$0xf]
    %v352 = vld [vmem:[#allocation8 + $0x68] sm:$0xf]
    %v353 = vld [vmem:[#allocation8 + $0x6c] sm:$0xf]
    %v354 = vld [vmem:[#allocation8 + $0x70] sm:$0xf]
    %v355 = vld [vmem:[#allocation8 + $0x74] sm:$0xf]
    %v356 = vld [vmem:[#allocation8 + $0x78] sm:$0xf]
    %v357 = vld [vmem:[#allocation8 + $0x7c] sm:$0xf]
    %v358 = vld [vmem:[%s4] sm:$0x1]
    %v360 = vlaneseq
    %v361 = vshrl.u32 %v360, 7
    %v362 = vsub.s32 0, %v361
    %v363 = vrot.slane %v358, %v362
    %v397 = vunpack.c.l.b16 %v326
    %v398 = vunpack.c.l.b16 %v327
    %v399 = vunpack.c.l.b16 %v328
    %v400 = vunpack.c.l.b16 %v329
    %v401 = vunpack.c.l.b16 %v330
    %v402 = vunpack.c.l.b16 %v331
    %v403 = vunpack.c.l.b16 %v332
    %v404 = vunpack.c.l.b16 %v333
    %v405 = vunpack.c.l.b16 %v334
    %v406 = vunpack.c.l.b16 %v335
    %v407 = vunpack.c.l.b16 %v336
    %v408 = vunpack.c.l.b16 %v337
    %v409 = vunpack.c.l.b16 %v338
    %v410 = vunpack.c.l.b16 %v339
    %v411 = vunpack.c.l.b16 %v340
    %v412 = vunpack.c.l.b16 %v341
    %v413 = vunpack.c.l.b16 %v342
    %v414 = vunpack.c.l.b16 %v343
    %v415 = vunpack.c.l.b16 %v344
    %v416 = vunpack.c.l.b16 %v345
    %v417 = vunpack.c.l.b16 %v346
    %v418 = vunpack.c.l.b16 %v347
    %v419 = vunpack.c.l.b16 %v348
    %v420 = vunpack.c.l.b16 %v349
    %v421 = vunpack.c.l.b16 %v350
    %v422 = vunpack.c.l.b16 %v351
    %v423 = vunpack.c.l.b16 %v352
    %v424 = vunpack.c.l.b16 %v353
    %v425 = vunpack.c.l.b16 %v354
    %v426 = vunpack.c.l.b16 %v355
    %v427 = vunpack.c.l.b16 %v356
    %v428 = vunpack.c.l.b16 %v357
    %v429 = vpack.c.b16 %v398, %v397
    %v430 = vpack.c.b16 %v400, %v399
    %v431 = vpack.c.b16 %v402, %v401
    %v432 = vpack.c.b16 %v404, %v403
    %v433 = vpack.c.b16 %v406, %v405
    %v434 = vpack.c.b16 %v408, %v407
    %v435 = vpack.c.b16 %v410, %v409
    %v436 = vpack.c.b16 %v412, %v411
    %v437 = vpack.c.b16 %v414, %v413
    %v438 = vpack.c.b16 %v416, %v415
    %v439 = vpack.c.b16 %v418, %v417
    %v440 = vpack.c.b16 %v420, %v419
    %v441 = vpack.c.b16 %v422, %v421
    %v442 = vpack.c.b16 %v424, %v423
    %v443 = vpack.c.b16 %v426, %v425
    %v444 = vpack.c.b16 %v428, %v427
    %461 = vmatprep.subr.bf16.mxu0 0
    %462 = vmatpush1.bf16.msra.mxu0 %v429
    %463 = vmatprep.subr.bf16.mxu0 0
    %464 = vmatpush1.bf16.msra.mxu0 %v430
    %465 = vmatprep.subr.bf16.mxu0 0
    %466 = vmatpush1.bf16.msra.mxu0 %v431
    %467 = vmatprep.subr.bf16.mxu0 0
    %468 = vmatpush1.bf16.msra.mxu0 %v432
    %469 = vmatprep.subr.bf16.mxu0 0
    %470 = vmatpush1.bf16.msra.mxu0 %v433
    %471 = vmatprep.subr.bf16.mxu0 0
    %472 = vmatpush1.bf16.msra.mxu0 %v434
    %473 = vmatprep.subr.bf16.mxu0 0
    %474 = vmatpush1.bf16.msra.mxu0 %v435
    %475 = vmatprep.subr.bf16.mxu0 0
    %476 = vmatpush1.bf16.msra.mxu0 %v436
    %477 = vmatprep.subr.bf16.mxu0 0
    %478 = vmatpush1.bf16.msra.mxu0 %v437
    %479 = vmatprep.subr.bf16.mxu0 0
    %480 = vmatpush1.bf16.msra.mxu0 %v438
    %481 = vmatprep.subr.bf16.mxu0 0
    %482 = vmatpush1.bf16.msra.mxu0 %v439
    %483 = vmatprep.subr.bf16.mxu0 0
    %484 = vmatpush1.bf16.msra.mxu0 %v440
    %485 = vmatprep.subr.bf16.mxu0 0
    %486 = vmatpush1.bf16.msra.mxu0 %v441
    %487 = vmatprep.subr.bf16.mxu0 0
    %488 = vmatpush1.bf16.msra.mxu0 %v442
    %489 = vmatprep.subr.bf16.mxu0 0
    %490 = vmatpush1.bf16.msra.mxu0 %v443
    %491 = vmatprep.subr.bf16.mxu0 0
    %492 = vmatpush1.bf16.msra.mxu0 %v444
    %493 = vmatprep.mubr.bf16.mxu0 %v318
    %494 = vmatmul.mubr.bf16.gmra.mrb[0].mxu0 %v165
    %v495 = vpop.f32.mrb[0].mxu0
    %v496 = vadd.f32 %v363, %v495
    %v497 = vpop.f32.mrb[0].mxu0
    %v498 = vpop.f32.mrb[0].mxu0
    %v499 = vadd.f32 %v363, %v498
    %v500 = vpop.f32.mrb[0].mxu0
    %501 = vmatprep.mubr.bf16.mxu0 %v319
    %502 = vmatmul.mubr.bf16.gmra.mrb[0].mxu0 %v166
    %v503 = vpop.f32.mrb[0].mxu0
    %v504 = vadd.f32 %v363, %v503
    %v505 = vpop.f32.mrb[0].mxu0
    %v506 = vpop.f32.mrb[0].mxu0
    %v507 = vadd.f32 %v363, %v506
    %v508 = vpop.f32.mrb[0].mxu0
    %509 = vmatprep.mubr.bf16.mxu0 %v320
    %510 = vmatmul.mubr.bf16.gmra.mrb[0].mxu0 %v167
    %v511 = vpop.f32.mrb[0].mxu0
    %v512 = vadd.f32 %v363, %v511
    %v513 = vpop.f32.mrb[0].mxu0
    %v514 = vpop.f32.mrb[0].mxu0
    %v515 = vadd.f32 %v363, %v514
    %v516 = vpop.f32.mrb[0].mxu0
    %517 = vmatprep.mubr.bf16.mxu0 %v321
    %518 = vmatmul.mubr.bf16.gmra.mrb[0].mxu0 %v168
    %v519 = vpop.f32.mrb[0].mxu0
    %v520 = vadd.f32 %v363, %v519
    %v521 = vpop.f32.mrb[0].mxu0
    %v522 = vpop.f32.mrb[0].mxu0
    %v523 = vadd.f32 %v363, %v522
    %v524 = vpop.f32.mrb[0].mxu0
    %525 = vmatprep.mubr.bf16.mxu0 %v322
    %526 = vmatmul.mubr.bf16.gmra.mrb[0].mxu0 %v169
    %v527 = vpop.f32.mrb[0].mxu0
    %v528 = vadd.f32 %v363, %v527
    %v529 = vpop.f32.mrb[0].mxu0
    %v530 = vpop.f32.mrb[0].mxu0
    %v531 = vadd.f32 %v363, %v530
    %v532 = vpop.f32.mrb[0].mxu0
    %533 = vmatprep.mubr.bf16.mxu0 %v323
    %534 = vmatmul.mubr.bf16.gmra.mrb[0].mxu0 %v170
    %v535 = vpop.f32.mrb[0].mxu0
    %v536 = vadd.f32 %v363, %v535
    %v537 = vpop.f32.mrb[0].mxu0
    %v538 = vpop.f32.mrb[0].mxu0
    %v539 = vadd.f32 %v363, %v538
    %v540 = vpop.f32.mrb[0].mxu0
    %541 = vmatprep.mubr.bf16.mxu0 %v324
    %542 = vmatmul.mubr.bf16.gmra.mrb[0].mxu0 %v171
    %v543 = vpop.f32.mrb[0].mxu0
    %v544 = vadd.f32 %v363, %v543
    %v545 = vpop.f32.mrb[0].mxu0
    %v546 = vpop.f32.mrb[0].mxu0
    %v547 = vadd.f32 %v363, %v546
    %v548 = vpop.f32.mrb[0].mxu0
    %549 = vmatprep.mubr.bf16.mxu0 %v325
    %550 = vmatmul.mubr.bf16.gmra.mrb[0].mxu0 %v172
    %v551 = vpop.f32.mrb[0].mxu0
    %v552 = vadd.f32 %v363, %v551
    %v553 = vpop.f32.mrb[0].mxu0
    %v554 = vpop.f32.mrb[0].mxu0
    %v555 = vadd.f32 %v363, %v554
    %v556 = vpop.f32.mrb[0].mxu0
    %557 = vdwg.mxu0
    %v558 = vmax.f32 %v496, 0.0
    %v559 = vmax.f32 %v499, 0.0
    %v560 = vmax.f32 %v504, 0.0
    %v561 = vmax.f32 %v507, 0.0
    %v562 = vmax.f32 %v512, 0.0
    %v563 = vmax.f32 %v515, 0.0
    %v564 = vmax.f32 %v520, 0.0
    %v565 = vmax.f32 %v523, 0.0
    %v566 = vmax.f32 %v528, 0.0
    %v567 = vmax.f32 %v531, 0.0
    %v568 = vmax.f32 %v536, 0.0
    %v569 = vmax.f32 %v539, 0.0
    %v570 = vmax.f32 %v544, 0.0
    %v571 = vmax.f32 %v547, 0.0
    %v572 = vmax.f32 %v552, 0.0
    %v573 = vmax.f32 %v555, 0.0
    %v574 = vpack.c.bf16 %v559, %v558
    %v575 = vpack.c.bf16 %v561, %v560
    %v576 = vpack.c.bf16 %v563, %v562
    %v577 = vpack.c.bf16 %v565, %v564
    %v578 = vpack.c.bf16 %v567, %v566
    %v579 = vpack.c.bf16 %v569, %v568
    %v580 = vpack.c.bf16 %v571, %v570
    %v581 = vpack.c.bf16 %v573, %v572
    %582 = vmatprep.subr.bf16.mxu0 0
    %583 = vmatpush1.bf16.msra.mxu0 %v574
    %584 = vmatprep.subr.bf16.mxu0 0
    %585 = vmatpush1.bf16.msra.mxu0 %v575
    %586 = vmatprep.subr.bf16.mxu0 0
    %587 = vmatpush1.bf16.msra.mxu0 %v576
    %588 = vmatprep.subr.bf16.mxu0 0
    %589 = vmatpush1.bf16.msra.mxu0 %v577
    %590 = vmatprep.subr.bf16.mxu0 0
    %591 = vmatpush1.bf16.msra.mxu0 %v578
    %592 = vmatprep.subr.bf16.mxu0 0
    %593 = vmatpush1.bf16.msra.mxu0 %v579
    %594 = vmatprep.subr.bf16.mxu0 0
    %595 = vmatpush1.bf16.msra.mxu0 %v580
    %596 = vmatprep.subr.bf16.mxu0 0
    %597 = vmatpush1.bf16.msra.mxu0 %v581
    %598 = vmatprep.subr.bf16.mxu0 0
    %599 = vmatpush1.bf16.msra.mxu0 0
    %600 = vmatprep.subr.bf16.mxu0 0
    %601 = vmatpush1.bf16.msra.mxu0 0
    %602 = vmatprep.subr.bf16.mxu0 0
    %603 = vmatpush1.bf16.msra.mxu0 0
    %604 = vmatprep.subr.bf16.mxu0 0
    %605 = vmatpush1.bf16.msra.mxu0 0
    %606 = vmatprep.subr.bf16.mxu0 0
    %607 = vmatpush1.bf16.msra.mxu0 0
    %608 = vmatprep.subr.bf16.mxu0 0
    %609 = vmatpush1.bf16.msra.mxu0 0
    %610 = vmatprep.subr.bf16.mxu0 0
    %611 = vmatpush1.bf16.msra.mxu0 0
    %612 = vmatprep.subr.bf16.mxu0 0
    %613 = vmatpush1.bf16.msra.mxu0 0
    %614 = vmatprep.mubr.bf16.mxu0 0
    %615 = vmatmul.mubr.bf16.gmra.mrb[0].mxu0 %v205
    %v616 = vpop.f32.mrb[0].mxu0
    %v617 = vadd.f32 0.0, %v616
    %v618 = vpop.f32.mrb[0].mxu0
    %v619 = vpop.f32.mrb[0].mxu0
    %v620 = vadd.f32 0.0, %v619
    %v621 = vpop.f32.mrb[0].mxu0
    %622 = vmatprep.mubr.bf16.mxu0 0
    %623 = vmatmul.mubr.bf16.gmra.mrb[0].mxu0 %v206
    %v624 = vpop.f32.mrb[0].mxu0
    %v625 = vadd.f32 0.0, %v624
    %v626 = vpop.f32.mrb[0].mxu0
    %v627 = vpop.f32.mrb[0].mxu0
    %v628 = vadd.f32 0.0, %v627
    %v629 = vpop.f32.mrb[0].mxu0
    %630 = vmatprep.mubr.bf16.mxu0 0
    %631 = vmatmul.mubr.bf16.gmra.mrb[0].mxu0 %v207
    %v632 = vpop.f32.mrb[0].mxu0
    %v633 = vadd.f32 0.0, %v632
    %v634 = vpop.f32.mrb[0].mxu0
    %v635 = vpop.f32.mrb[0].mxu0
    %v636 = vadd.f32 0.0, %v635
    %v637 = vpop.f32.mrb[0].mxu0
    %638 = vmatprep.mubr.bf16.mxu0 0
    %639 = vmatmul.mubr.bf16.gmra.mrb[0].mxu0 %v208
    %v640 = vpop.f32.mrb[0].mxu0
    %v641 = vadd.f32 0.0, %v640
    %v642 = vpop.f32.mrb[0].mxu0
    %v643 = vpop.f32.mrb[0].mxu0
    %v644 = vadd.f32 0.0, %v643
    %v645 = vpop.f32.mrb[0].mxu0
    %646 = vmatprep.mubr.bf16.mxu0 0
    %647 = vmatmul.mubr.bf16.gmra.mrb[0].mxu0 %v209
    %v648 = vpop.f32.mrb[0].mxu0
    %v649 = vadd.f32 0.0, %v648
    %v650 = vpop.f32.mrb[0].mxu0
    %v651 = vpop.f32.mrb[0].mxu0
    %v652 = vadd.f32 0.0, %v651
    %v653 = vpop.f32.mrb[0].mxu0
    %654 = vmatprep.mubr.bf16.mxu0 0
    %655 = vmatmul.mubr.bf16.gmra.mrb[0].mxu0 %v210
    %v656 = vpop.f32.mrb[0].mxu0
    %v657 = vadd.f32 0.0, %v656
    %v658 = vpop.f32.mrb[0].mxu0
    %v659 = vpop.f32.mrb[0].mxu0
    %v660 = vadd.f32 0.0, %v659
    %v661 = vpop.f32.mrb[0].mxu0
    %662 = vmatprep.mubr.bf16.mxu0 0
    %663 = vmatmul.mubr.bf16.gmra.mrb[0].mxu0 %v211
    %v664 = vpop.f32.mrb[0].mxu0
    %v665 = vadd.f32 0.0, %v664
    %v666 = vpop.f32.mrb[0].mxu0
    %v667 = vpop.f32.mrb[0].mxu0
    %v668 = vadd.f32 0.0, %v667
    %v669 = vpop.f32.mrb[0].mxu0
    %670 = vmatprep.mubr.bf16.mxu0 0
    %671 = vmatmul.mubr.bf16.gmra.mrb[0].mxu0 %v212
    %v672 = vpop.f32.mrb[0].mxu0
    %v673 = vadd.f32 0.0, %v672
    %v674 = vpop.f32.mrb[0].mxu0
    %v675 = vpop.f32.mrb[0].mxu0
    %v676 = vadd.f32 0.0, %v675
    %v677 = vpop.f32.mrb[0].mxu0
    %678 = vdwg.mxu0
    %v679 = vpack.c.bf16 %v620, %v617
    %v680 = vpack.c.bf16 %v628, %v625
    %v681 = vpack.c.bf16 %v636, %v633
    %v682 = vpack.c.bf16 %v644, %v641
    %v683 = vpack.c.bf16 %v652, %v649
    %v684 = vpack.c.bf16 %v660, %v657
    %v685 = vpack.c.bf16 %v668, %v665
    %v686 = vpack.c.bf16 %v676, %v673
    %v687 = vld [vmem:[#allocation10] sm:$0xf]
    %v688 = vld [vmem:[#allocation10 + $0x4] sm:$0xf]
    %v689 = vld [vmem:[#allocation10 + $0x8] sm:$0xf]
    %v690 = vld [vmem:[#allocation10 + $0xc] sm:$0xf]
    %v691 = vld [vmem:[#allocation10 + $0x10] sm:$0xf]
    %v692 = vld [vmem:[#allocation10 + $0x14] sm:$0xf]
    %v693 = vld [vmem:[#allocation10 + $0x18] sm:$0xf]
    %v694 = vld [vmem:[#allocation10 + $0x1c] sm:$0xf]
    %v695 = vld [vmem:[#allocation10 + $0x20] sm:$0xf]
    %v696 = vld [vmem:[#allocation10 + $0x24] sm:$0xf]
    %v697 = vld [vmem:[#allocation10 + $0x28] sm:$0xf]
    %v698 = vld [vmem:[#allocation10 + $0x2c] sm:$0xf]
    %v699 = vld [vmem:[#allocation10 + $0x30] sm:$0xf]
    %v700 = vld [vmem:[#allocation10 + $0x34] sm:$0xf]
    %v701 = vld [vmem:[#allocation10 + $0x38] sm:$0xf]
    %v702 = vld [vmem:[#allocation10 + $0x3c] sm:$0xf]
    %v703 = vld [vmem:[#allocation10 + $0x40] sm:$0xf]
    %v704 = vld [vmem:[#allocation10 + $0x44] sm:$0xf]
    %v705 = vld [vmem:[#allocation10 + $0x48] sm:$0xf]
    %v706 = vld [vmem:[#allocation10 + $0x4c] sm:$0xf]
    %v707 = vld [vmem:[#allocation10 + $0x50] sm:$0xf]
    %v708 = vld [vmem:[#allocation10 + $0x54] sm:$0xf]
    %v709 = vld [vmem:[#allocation10 + $0x58] sm:$0xf]
    %v710 = vld [vmem:[#allocation10 + $0x5c] sm:$0xf]
    %v711 = vld [vmem:[#allocation10 + $0x60] sm:$0xf]
    %v712 = vld [vmem:[#allocation10 + $0x64] sm:$0xf]
    %v713 = vld [vmem:[#allocation10 + $0x68] sm:$0xf]
    %v714 = vld [vmem:[#allocation10 + $0x6c] sm:$0xf]
    %v715 = vld [vmem:[#allocation10 + $0x70] sm:$0xf]
    %v716 = vld [vmem:[#allocation10 + $0x74] sm:$0xf]
    %v717 = vld [vmem:[#allocation10 + $0x78] sm:$0xf]
    %v718 = vld [vmem:[#allocation10 + $0x7c] sm:$0xf]
    %v719 = vld [vmem:[%s6] sm:$0x1]
    %v721 = vlaneseq
    %v722 = vshrl.u32 %v721, 7
    %v723 = vsub.s32 0, %v722
    %v724 = vrot.slane %v719, %v723
    %v758 = vunpack.c.l.b16 %v687
    %v759 = vunpack.c.l.b16 %v688
    %v760 = vunpack.c.l.b16 %v689
    %v761 = vunpack.c.l.b16 %v690
    %v762 = vunpack.c.l.b16 %v691
    %v763 = vunpack.c.l.b16 %v692
    %v764 = vunpack.c.l.b16 %v693
    %v765 = vunpack.c.l.b16 %v694
    %v766 = vunpack.c.l.b16 %v695
    %v767 = vunpack.c.l.b16 %v696
    %v768 = vunpack.c.l.b16 %v697
    %v769 = vunpack.c.l.b16 %v698
    %v770 = vunpack.c.l.b16 %v699
    %v771 = vunpack.c.l.b16 %v700
    %v772 = vunpack.c.l.b16 %v701
    %v773 = vunpack.c.l.b16 %v702
    %v774 = vunpack.c.l.b16 %v703
    %v775 = vunpack.c.l.b16 %v704
    %v776 = vunpack.c.l.b16 %v705
    %v777 = vunpack.c.l.b16 %v706
    %v778 = vunpack.c.l.b16 %v707
    %v779 = vunpack.c.l.b16 %v708
    %v780 = vunpack.c.l.b16 %v709
    %v781 = vunpack.c.l.b16 %v710
    %v782 = vunpack.c.l.b16 %v711
    %v783 = vunpack.c.l.b16 %v712
    %v784 = vunpack.c.l.b16 %v713
    %v785 = vunpack.c.l.b16 %v714
    %v786 = vunpack.c.l.b16 %v715
    %v787 = vunpack.c.l.b16 %v716
    %v788 = vunpack.c.l.b16 %v717
    %v789 = vunpack.c.l.b16 %v718
    %v790 = vpack.c.b16 %v759, %v758
    %v791 = vpack.c.b16 %v761, %v760
    %v792 = vpack.c.b16 %v763, %v762
    %v793 = vpack.c.b16 %v765, %v764
    %v794 = vpack.c.b16 %v767, %v766
    %v795 = vpack.c.b16 %v769, %v768
    %v796 = vpack.c.b16 %v771, %v770
    %v797 = vpack.c.b16 %v773, %v772
    %v798 = vpack.c.b16 %v775, %v774
    %v799 = vpack.c.b16 %v777, %v776
    %v800 = vpack.c.b16 %v779, %v778
    %v801 = vpack.c.b16 %v781, %v780
    %v802 = vpack.c.b16 %v783, %v782
    %v803 = vpack.c.b16 %v785, %v784
    %v804 = vpack.c.b16 %v787, %v786
    %v805 = vpack.c.b16 %v789, %v788
    %822 = vmatprep.subr.bf16.mxu0 0
    %823 = vmatpush1.bf16.msra.mxu0 %v790
    %824 = vmatprep.subr.bf16.mxu0 0
    %825 = vmatpush1.bf16.msra.mxu0 %v791
    %826 = vmatprep.subr.bf16.mxu0 0
    %827 = vmatpush1.bf16.msra.mxu0 %v792
    %828 = vmatprep.subr.bf16.mxu0 0
    %829 = vmatpush1.bf16.msra.mxu0 %v793
    %830 = vmatprep.subr.bf16.mxu0 0
    %831 = vmatpush1.bf16.msra.mxu0 %v794
    %832 = vmatprep.subr.bf16.mxu0 0
    %833 = vmatpush1.bf16.msra.mxu0 %v795
    %834 = vmatprep.subr.bf16.mxu0 0
    %835 = vmatpush1.bf16.msra.mxu0 %v796
    %836 = vmatprep.subr.bf16.mxu0 0
    %837 = vmatpush1.bf16.msra.mxu0 %v797
    %838 = vmatprep.subr.bf16.mxu0 0
    %839 = vmatpush1.bf16.msra.mxu0 %v798
    %840 = vmatprep.subr.bf16.mxu0 0
    %841 = vmatpush1.bf16.msra.mxu0 %v799
    %842 = vmatprep.subr.bf16.mxu0 0
    %843 = vmatpush1.bf16.msra.mxu0 %v800
    %844 = vmatprep.subr.bf16.mxu0 0
    %845 = vmatpush1.bf16.msra.mxu0 %v801
    %846 = vmatprep.subr.bf16.mxu0 0
    %847 = vmatpush1.bf16.msra.mxu0 %v802
    %848 = vmatprep.subr.bf16.mxu0 0
    %849 = vmatpush1.bf16.msra.mxu0 %v803
    %850 = vmatprep.subr.bf16.mxu0 0
    %851 = vmatpush1.bf16.msra.mxu0 %v804
    %852 = vmatprep.subr.bf16.mxu0 0
    %853 = vmatpush1.bf16.msra.mxu0 %v805
    %854 = vmatprep.mubr.bf16.mxu0 %v679
    %855 = vmatmul.mubr.bf16.gmra.mrb[0].mxu0 %v574
    %v856 = vpop.f32.mrb[0].mxu0
    %v857 = vadd.f32 %v724, %v856
    %v858 = vpop.f32.mrb[0].mxu0
    %v859 = vpop.f32.mrb[0].mxu0
    %v860 = vadd.f32 %v724, %v859
    %v861 = vpop.f32.mrb[0].mxu0
    %862 = vmatprep.mubr.bf16.mxu0 %v680
    %863 = vmatmul.mubr.bf16.gmra.mrb[0].mxu0 %v575
    %v864 = vpop.f32.mrb[0].mxu0
    %v865 = vadd.f32 %v724, %v864
    %v866 = vpop.f32.mrb[0].mxu0
    %v867 = vpop.f32.mrb[0].mxu0
    %v868 = vadd.f32 %v724, %v867
    %v869 = vpop.f32.mrb[0].mxu0
    %870 = vmatprep.mubr.bf16.mxu0 %v681
    %871 = vmatmul.mubr.bf16.gmra.mrb[0].mxu0 %v576
    %v872 = vpop.f32.mrb[0].mxu0
    %v873 = vadd.f32 %v724, %v872
    %v874 = vpop.f32.mrb[0].mxu0
    %v875 = vpop.f32.mrb[0].mxu0
    %v876 = vadd.f32 %v724, %v875
    %v877 = vpop.f32.mrb[0].mxu0
    %878 = vmatprep.mubr.bf16.mxu0 %v682
    %879 = vmatmul.mubr.bf16.gmra.mrb[0].mxu0 %v577
    %v880 = vpop.f32.mrb[0].mxu0
    %v881 = vadd.f32 %v724, %v880
    %v882 = vpop.f32.mrb[0].mxu0
    %v883 = vpop.f32.mrb[0].mxu0
    %v884 = vadd.f32 %v724, %v883
    %v885 = vpop.f32.mrb[0].mxu0
    %886 = vmatprep.mubr.bf16.mxu0 %v683
    %887 = vmatmul.mubr.bf16.gmra.mrb[0].mxu0 %v578
    %v888 = vpop.f32.mrb[0].mxu0
    %v889 = vadd.f32 %v724, %v888
    %v890 = vpop.f32.mrb[0].mxu0
    %v891 = vpop.f32.mrb[0].mxu0
    %v892 = vadd.f32 %v724, %v891
    %v893 = vpop.f32.mrb[0].mxu0
    %894 = vmatprep.mubr.bf16.mxu0 %v684
    %895 = vmatmul.mubr.bf16.gmra.mrb[0].mxu0 %v579
    %v896 = vpop.f32.mrb[0].mxu0
    %v897 = vadd.f32 %v724, %v896
    %v898 = vpop.f32.mrb[0].mxu0
    %v899 = vpop.f32.mrb[0].mxu0
    %v900 = vadd.f32 %v724, %v899
    %v901 = vpop.f32.mrb[0].mxu0
    %902 = vmatprep.mubr.bf16.mxu0 %v685
    %903 = vmatmul.mubr.bf16.gmra.mrb[0].mxu0 %v580
    %v904 = vpop.f32.mrb[0].mxu0
    %v905 = vadd.f32 %v724, %v904
    %v906 = vpop.f32.mrb[0].mxu0
    %v907 = vpop.f32.mrb[0].mxu0
    %v908 = vadd.f32 %v724, %v907
    %v909 = vpop.f32.mrb[0].mxu0
    %910 = vmatprep.mubr.bf16.mxu0 %v686
    %911 = vmatmul.mubr.bf16.gmra.mrb[0].mxu0 %v581
    %v912 = vpop.f32.mrb[0].mxu0
    %v913 = vadd.f32 %v724, %v912
    %v914 = vpop.f32.mrb[0].mxu0
    %v915 = vpop.f32.mrb[0].mxu0
    %v916 = vadd.f32 %v724, %v915
    %v917 = vpop.f32.mrb[0].mxu0
    %918 = vdwg.mxu0
    %v919 = vmax.f32 %v857, 0.0
    %v920 = vmax.f32 %v860, 0.0
    %v921 = vmax.f32 %v865, 0.0
    %v922 = vmax.f32 %v868, 0.0
    %v923 = vmax.f32 %v873, 0.0
    %v924 = vmax.f32 %v876, 0.0
    %v925 = vmax.f32 %v881, 0.0
    %v926 = vmax.f32 %v884, 0.0
    %v927 = vmax.f32 %v889, 0.0
    %v928 = vmax.f32 %v892, 0.0
    %v929 = vmax.f32 %v897, 0.0
    %v930 = vmax.f32 %v900, 0.0
    %v931 = vmax.f32 %v905, 0.0
    %v932 = vmax.f32 %v908, 0.0
    %v933 = vmax.f32 %v913, 0.0
    %v934 = vmax.f32 %v916, 0.0
    %v935 = vpack.c.bf16 %v920, %v919
    %v936 = vpack.c.bf16 %v922, %v921
    %v937 = vpack.c.bf16 %v924, %v923
    %v938 = vpack.c.bf16 %v926, %v925
    %v939 = vpack.c.bf16 %v928, %v927
    %v940 = vpack.c.bf16 %v930, %v929
    %v941 = vpack.c.bf16 %v932, %v931
    %v942 = vpack.c.bf16 %v934, %v933
    %943 = vmatprep.subr.bf16.mxu0 0
    %944 = vmatpush1.bf16.msra.mxu0 %v935
    %945 = vmatprep.subr.bf16.mxu0 0
    %946 = vmatpush1.bf16.msra.mxu0 %v936
    %947 = vmatprep.subr.bf16.mxu0 0
    %948 = vmatpush1.bf16.msra.mxu0 %v937
    %949 = vmatprep.subr.bf16.mxu0 0
    %950 = vmatpush1.bf16.msra.mxu0 %v938
    %951 = vmatprep.subr.bf16.mxu0 0
    %952 = vmatpush1.bf16.msra.mxu0 %v939
    %953 = vmatprep.subr.bf16.mxu0 0
    %954 = vmatpush1.bf16.msra.mxu0 %v940
    %955 = vmatprep.subr.bf16.mxu0 0
    %956 = vmatpush1.bf16.msra.mxu0 %v941
    %957 = vmatprep.subr.bf16.mxu0 0
    %958 = vmatpush1.bf16.msra.mxu0 %v942
    %959 = vmatprep.subr.bf16.mxu0 0
    %960 = vmatpush1.bf16.msra.mxu0 0
    %961 = vmatprep.subr.bf16.mxu0 0
    %962 = vmatpush1.bf16.msra.mxu0 0
    %963 = vmatprep.subr.bf16.mxu0 0
    %964 = vmatpush1.bf16.msra.mxu0 0
    %965 = vmatprep.subr.bf16.mxu0 0
    %966 = vmatpush1.bf16.msra.mxu0 0
    %967 = vmatprep.subr.bf16.mxu0 0
    %968 = vmatpush1.bf16.msra.mxu0 0
    %969 = vmatprep.subr.bf16.mxu0 0
    %970 = vmatpush1.bf16.msra.mxu0 0
    %971 = vmatprep.subr.bf16.mxu0 0
    %972 = vmatpush1.bf16.msra.mxu0 0
    %973 = vmatprep.subr.bf16.mxu0 0
    %974 = vmatpush1.bf16.msra.mxu0 0
    %975 = vmatprep.mubr.bf16.mxu0 0
    %976 = vmatmul.mubr.bf16.gmra.mrb[0].mxu0 %v205
    %v977 = vpop.f32.mrb[0].mxu0
    %v978 = vadd.f32 0.0, %v977
    %v979 = vpop.f32.mrb[0].mxu0
    %v980 = vpop.f32.mrb[0].mxu0
    %v981 = vadd.f32 0.0, %v980
    %v982 = vpop.f32.mrb[0].mxu0
    %983 = vmatprep.mubr.bf16.mxu0 0
    %984 = vmatmul.mubr.bf16.gmra.mrb[0].mxu0 %v206
    %v985 = vpop.f32.mrb[0].mxu0
    %v986 = vadd.f32 0.0, %v985
    %v987 = vpop.f32.mrb[0].mxu0
    %v988 = vpop.f32.mrb[0].mxu0
    %v989 = vadd.f32 0.0, %v988
    %v990 = vpop.f32.mrb[0].mxu0
    %991 = vmatprep.mubr.bf16.mxu0 0
    %992 = vmatmul.mubr.bf16.gmra.mrb[0].mxu0 %v207
    %v993 = vpop.f32.mrb[0].mxu0
    %v994 = vadd.f32 0.0, %v993
    %v995 = vpop.f32.mrb[0].mxu0
    %v996 = vpop.f32.mrb[0].mxu0
    %v997 = vadd.f32 0.0, %v996
    %v998 = vpop.f32.mrb[0].mxu0
    %999 = vmatprep.mubr.bf16.mxu0 0
    %1000 = vmatmul.mubr.bf16.gmra.mrb[0].mxu0 %v208
    %v1001 = vpop.f32.mrb[0].mxu0
    %v1002 = vadd.f32 0.0, %v1001
    %v1003 = vpop.f32.mrb[0].mxu0
    %v1004 = vpop.f32.mrb[0].mxu0
    %v1005 = vadd.f32 0.0, %v1004
    %v1006 = vpop.f32.mrb[0].mxu0
    %1007 = vmatprep.mubr.bf16.mxu0 0
    %1008 = vmatmul.mubr.bf16.gmra.mrb[0].mxu0 %v209
    %v1009 = vpop.f32.mrb[0].mxu0
    %v1010 = vadd.f32 0.0, %v1009
    %v1011 = vpop.f32.mrb[0].mxu0
    %v1012 = vpop.f32.mrb[0].mxu0
    %v1013 = vadd.f32 0.0, %v1012
    %v1014 = vpop.f32.mrb[0].mxu0
    %1015 = vmatprep.mubr.bf16.mxu0 0
    %1016 = vmatmul.mubr.bf16.gmra.mrb[0].mxu0 %v210
    %v1017 = vpop.f32.mrb[0].mxu0
    %v1018 = vadd.f32 0.0, %v1017
    %v1019 = vpop.f32.mrb[0].mxu0
    %v1020 = vpop.f32.mrb[0].mxu0
    %v1021 = vadd.f32 0.0, %v1020
    %v1022 = vpop.f32.mrb[0].mxu0
    %1023 = vmatprep.mubr.bf16.mxu0 0
    %1024 = vmatmul.mubr.bf16.gmra.mrb[0].mxu0 %v211
    %v1025 = vpop.f32.mrb[0].mxu0
    %v1026 = vadd.f32 0.0, %v1025
    %v1027 = vpop.f32.mrb[0].mxu0
    %v1028 = vpop.f32.mrb[0].mxu0
    %v1029 = vadd.f32 0.0, %v1028
    %v1030 = vpop.f32.mrb[0].mxu0
    %1031 = vmatprep.mubr.bf16.mxu0 0
    %1032 = vmatmul.mubr.bf16.gmra.mrb[0].mxu0 %v212
    %v1033 = vpop.f32.mrb[0].mxu0
    %v1034 = vadd.f32 0.0, %v1033
    %v1035 = vpop.f32.mrb[0].mxu0
    %v1036 = vpop.f32.mrb[0].mxu0
    %v1037 = vadd.f32 0.0, %v1036
    %v1038 = vpop.f32.mrb[0].mxu0
    %1039 = vdwg.mxu0
    %v1040 = vpack.c.bf16 %v981, %v978
    %v1041 = vpack.c.bf16 %v989, %v986
    %v1042 = vpack.c.bf16 %v997, %v994
    %v1043 = vpack.c.bf16 %v1005, %v1002
    %v1044 = vpack.c.bf16 %v1013, %v1010
    %v1045 = vpack.c.bf16 %v1021, %v1018
    %v1046 = vpack.c.bf16 %v1029, %v1026
    %v1047 = vpack.c.bf16 %v1037, %v1034
    %v1048 = vld [vmem:[#allocation11] sm:$0xf]
    %v1049 = vld [vmem:[#allocation11 + $0x4] sm:$0xf]
    %v1050 = vld [vmem:[#allocation11 + $0x8] sm:$0xf]
    %v1051 = vld [vmem:[#allocation11 + $0xc] sm:$0xf]
    %v1052 = vld [vmem:[#allocation11 + $0x10] sm:$0xf]
    %v1053 = vld [vmem:[#allocation11 + $0x14] sm:$0xf]
    %v1054 = vld [vmem:[#allocation11 + $0x18] sm:$0xf]
    %v1055 = vld [vmem:[#allocation11 + $0x1c] sm:$0xf]
    %v1056 = vld [vmem:[#allocation11 + $0x20] sm:$0xf]
    %v1057 = vld [vmem:[#allocation11 + $0x24] sm:$0xf]
    %v1058 = vld [vmem:[#allocation11 + $0x28] sm:$0xf]
    %v1059 = vld [vmem:[#allocation11 + $0x2c] sm:$0xf]
    %v1060 = vld [vmem:[#allocation11 + $0x30] sm:$0xf]
    %v1061 = vld [vmem:[#allocation11 + $0x34] sm:$0xf]
    %v1062 = vld [vmem:[#allocation11 + $0x38] sm:$0xf]
    %v1063 = vld [vmem:[#allocation11 + $0x3c] sm:$0xf]
    %v1064 = vld [vmem:[#allocation11 + $0x40] sm:$0xf]
    %v1065 = vld [vmem:[#allocation11 + $0x44] sm:$0xf]
    %v1066 = vld [vmem:[#allocation11 + $0x48] sm:$0xf]
    %v1067 = vld [vmem:[#allocation11 + $0x4c] sm:$0xf]
    %v1068 = vld [vmem:[#allocation11 + $0x50] sm:$0xf]
    %v1069 = vld [vmem:[#allocation11 + $0x54] sm:$0xf]
    %v1070 = vld [vmem:[#allocation11 + $0x58] sm:$0xf]
    %v1071 = vld [vmem:[#allocation11 + $0x5c] sm:$0xf]
    %v1072 = vld [vmem:[#allocation11 + $0x60] sm:$0xf]
    %v1073 = vld [vmem:[#allocation11 + $0x64] sm:$0xf]
    %v1074 = vld [vmem:[#allocation11 + $0x68] sm:$0xf]
    %v1075 = vld [vmem:[#allocation11 + $0x6c] sm:$0xf]
    %v1076 = vld [vmem:[#allocation11 + $0x70] sm:$0xf]
    %v1077 = vld [vmem:[#allocation11 + $0x74] sm:$0xf]
    %v1078 = vld [vmem:[#allocation11 + $0x78] sm:$0xf]
    %v1079 = vld [vmem:[#allocation11 + $0x7c] sm:$0xf]
    %v1080 = vld [vmem:[%s8] sm:$0x1]
    %v1082 = vlaneseq
    %v1083 = vshrl.u32 %v1082, 7
    %v1084 = vsub.s32 0, %v1083
    %v1085 = vrot.slane %v1080, %v1084
    %v1119 = vunpack.c.l.b16 %v1048
    %v1120 = vunpack.c.l.b16 %v1049
    %v1121 = vunpack.c.l.b16 %v1050
    %v1122 = vunpack.c.l.b16 %v1051
    %v1123 = vunpack.c.l.b16 %v1052
    %v1124 = vunpack.c.l.b16 %v1053
    %v1125 = vunpack.c.l.b16 %v1054
    %v1126 = vunpack.c.l.b16 %v1055
    %v1127 = vunpack.c.l.b16 %v1056
    %v1128 = vunpack.c.l.b16 %v1057
    %v1129 = vunpack.c.l.b16 %v1058
    %v1130 = vunpack.c.l.b16 %v1059
    %v1131 = vunpack.c.l.b16 %v1060
    %v1132 = vunpack.c.l.b16 %v1061
    %v1133 = vunpack.c.l.b16 %v1062
    %v1134 = vunpack.c.l.b16 %v1063
    %v1135 = vunpack.c.l.b16 %v1064
    %v1136 = vunpack.c.l.b16 %v1065
    %v1137 = vunpack.c.l.b16 %v1066
    %v1138 = vunpack.c.l.b16 %v1067
    %v1139 = vunpack.c.l.b16 %v1068
    %v1140 = vunpack.c.l.b16 %v1069
    %v1141 = vunpack.c.l.b16 %v1070
    %v1142 = vunpack.c.l.b16 %v1071
    %v1143 = vunpack.c.l.b16 %v1072
    %v1144 = vunpack.c.l.b16 %v1073
    %v1145 = vunpack.c.l.b16 %v1074
    %v1146 = vunpack.c.l.b16 %v1075
    %v1147 = vunpack.c.l.b16 %v1076
    %v1148 = vunpack.c.l.b16 %v1077
    %v1149 = vunpack.c.l.b16 %v1078
    %v1150 = vunpack.c.l.b16 %v1079
    %v1151 = vpack.c.b16 %v1120, %v1119
    %v1152 = vpack.c.b16 %v1122, %v1121
    %v1153 = vpack.c.b16 %v1124, %v1123
    %v1154 = vpack.c.b16 %v1126, %v1125
    %v1155 = vpack.c.b16 %v1128, %v1127
    %v1156 = vpack.c.b16 %v1130, %v1129
    %v1157 = vpack.c.b16 %v1132, %v1131
    %v1158 = vpack.c.b16 %v1134, %v1133
    %v1159 = vpack.c.b16 %v1136, %v1135
    %v1160 = vpack.c.b16 %v1138, %v1137
    %v1161 = vpack.c.b16 %v1140, %v1139
    %v1162 = vpack.c.b16 %v1142, %v1141
    %v1163 = vpack.c.b16 %v1144, %v1143
    %v1164 = vpack.c.b16 %v1146, %v1145
    %v1165 = vpack.c.b16 %v1148, %v1147
    %v1166 = vpack.c.b16 %v1150, %v1149
    %1183 = vmatprep.subr.bf16.mxu0 0
    %1184 = vmatpush1.bf16.msra.mxu0 %v1151
    %1185 = vmatprep.subr.bf16.mxu0 0
    %1186 = vmatpush1.bf16.msra.mxu0 %v1152
    %1187 = vmatprep.subr.bf16.mxu0 0
    %1188 = vmatpush1.bf16.msra.mxu0 %v1153
    %1189 = vmatprep.subr.bf16.mxu0 0
    %1190 = vmatpush1.bf16.msra.mxu0 %v1154
    %1191 = vmatprep.subr.bf16.mxu0 0
    %1192 = vmatpush1.bf16.msra.mxu0 %v1155
    %1193 = vmatprep.subr.bf16.mxu0 0
    %1194 = vmatpush1.bf16.msra.mxu0 %v1156
    %1195 = vmatprep.subr.bf16.mxu0 0
    %1196 = vmatpush1.bf16.msra.mxu0 %v1157
    %1197 = vmatprep.subr.bf16.mxu0 0
    %1198 = vmatpush1.bf16.msra.mxu0 %v1158
    %1199 = vmatprep.subr.bf16.mxu0 0
    %1200 = vmatpush1.bf16.msra.mxu0 %v1159
    %1201 = vmatprep.subr.bf16.mxu0 0
    %1202 = vmatpush1.bf16.msra.mxu0 %v1160
    %1203 = vmatprep.subr.bf16.mxu0 0
    %1204 = vmatpush1.bf16.msra.mxu0 %v1161
    %1205 = vmatprep.subr.bf16.mxu0 0
    %1206 = vmatpush1.bf16.msra.mxu0 %v1162
    %1207 = vmatprep.subr.bf16.mxu0 0
    %1208 = vmatpush1.bf16.msra.mxu0 %v1163
    %1209 = vmatprep.subr.bf16.mxu0 0
    %1210 = vmatpush1.bf16.msra.mxu0 %v1164
    %1211 = vmatprep.subr.bf16.mxu0 0
    %1212 = vmatpush1.bf16.msra.mxu0 %v1165
    %1213 = vmatprep.subr.bf16.mxu0 0
    %1214 = vmatpush1.bf16.msra.mxu0 %v1166
    %1215 = vmatprep.mubr.bf16.mxu0 %v1040
    %1216 = vmatmul.mubr.bf16.gmra.mrb[0].mxu0 %v935
    %v1217 = vpop.f32.mrb[0].mxu0
    %v1218 = vadd.f32 %v1085, %v1217
    %v1219 = vpop.f32.mrb[0].mxu0
    %v1220 = vpop.f32.mrb[0].mxu0
    %v1221 = vadd.f32 %v1085, %v1220
    %v1222 = vpop.f32.mrb[0].mxu0
    %1223 = vmatprep.mubr.bf16.mxu0 %v1041
    %1224 = vmatmul.mubr.bf16.gmra.mrb[0].mxu0 %v936
    %v1225 = vpop.f32.mrb[0].mxu0
    %v1226 = vadd.f32 %v1085, %v1225
    %v1227 = vpop.f32.mrb[0].mxu0
    %v1228 = vpop.f32.mrb[0].mxu0
    %v1229 = vadd.f32 %v1085, %v1228
    %v1230 = vpop.f32.mrb[0].mxu0
    %1231 = vmatprep.mubr.bf16.mxu0 %v1042
    %1232 = vmatmul.mubr.bf16.gmra.mrb[0].mxu0 %v937
    %v1233 = vpop.f32.mrb[0].mxu0
    %v1234 = vadd.f32 %v1085, %v1233
    %v1235 = vpop.f32.mrb[0].mxu0
    %v1236 = vpop.f32.mrb[0].mxu0
    %v1237 = vadd.f32 %v1085, %v1236
    %v1238 = vpop.f32.mrb[0].mxu0
    %1239 = vmatprep.mubr.bf16.mxu0 %v1043
    %1240 = vmatmul.mubr.bf16.gmra.mrb[0].mxu0 %v938
    %v1241 = vpop.f32.mrb[0].mxu0
    %v1242 = vadd.f32 %v1085, %v1241
    %v1243 = vpop.f32.mrb[0].mxu0
    %v1244 = vpop.f32.mrb[0].mxu0
    %v1245 = vadd.f32 %v1085, %v1244
    %v1246 = vpop.f32.mrb[0].mxu0
    %1247 = vmatprep.mubr.bf16.mxu0 %v1044
    %1248 = vmatmul.mubr.bf16.gmra.mrb[0].mxu0 %v939
    %v1249 = vpop.f32.mrb[0].mxu0
    %v1250 = vadd.f32 %v1085, %v1249
    %v1251 = vpop.f32.mrb[0].mxu0
    %v1252 = vpop.f32.mrb[0].mxu0
    %v1253 = vadd.f32 %v1085, %v1252
    %v1254 = vpop.f32.mrb[0].mxu0
    %1255 = vmatprep.mubr.bf16.mxu0 %v1045
    %1256 = vmatmul.mubr.bf16.gmra.mrb[0].mxu0 %v940
    %v1257 = vpop.f32.mrb[0].mxu0
    %v1258 = vadd.f32 %v1085, %v1257
    %v1259 = vpop.f32.mrb[0].mxu0
    %v1260 = vpop.f32.mrb[0].mxu0
    %v1261 = vadd.f32 %v1085, %v1260
    %v1262 = vpop.f32.mrb[0].mxu0
    %1263 = vmatprep.mubr.bf16.mxu0 %v1046
    %1264 = vmatmul.mubr.bf16.gmra.mrb[0].mxu0 %v941
    %v1265 = vpop.f32.mrb[0].mxu0
    %v1266 = vadd.f32 %v1085, %v1265
    %v1267 = vpop.f32.mrb[0].mxu0
    %v1268 = vpop.f32.mrb[0].mxu0
    %v1269 = vadd.f32 %v1085, %v1268
    %v1270 = vpop.f32.mrb[0].mxu0
    %1271 = vmatprep.mubr.bf16.mxu0 %v1047
    %1272 = vmatmul.mubr.bf16.gmra.mrb[0].mxu0 %v942
    %v1273 = vpop.f32.mrb[0].mxu0
    %v1274 = vadd.f32 %v1085, %v1273
    %v1275 = vpop.f32.mrb[0].mxu0
    %v1276 = vpop.f32.mrb[0].mxu0
    %v1277 = vadd.f32 %v1085, %v1276
    %v1278 = vpop.f32.mrb[0].mxu0
    %1279 = vdwg.mxu0
    %v1280 = vld [vmem:[#allocation7] sm:$0xff]
    %1281 = vmatprep.subr.mxu0 0.0
    %1282 = vmatpush1.msra.mxu0 %v1218
    %1283 = vmatprep.subr.mxu0 0.0
    %1284 = vmatpush1.msra.mxu0 %v1221
    %1285 = vmatprep.subr.mxu0 0.0
    %1286 = vmatpush1.msra.mxu0 %v1226
    %1287 = vmatprep.subr.mxu0 0.0
    %1288 = vmatpush1.msra.mxu0 %v1229
    %1289 = vmatprep.subr.mxu0 0.0
    %1290 = vmatpush1.msra.mxu0 %v1234
    %1291 = vmatprep.subr.mxu0 0.0
    %1292 = vmatpush1.msra.mxu0 %v1237
    %1293 = vmatprep.subr.mxu0 0.0
    %1294 = vmatpush1.msra.mxu0 %v1242
    %1295 = vmatprep.subr.mxu0 0.0
    %1296 = vmatpush1.msra.mxu0 %v1245
    %1297 = vmatprep.subr.mxu0 0.0
    %1298 = vmatpush1.msra.mxu0 %v1250
    %1299 = vmatprep.subr.mxu0 0.0
    %1300 = vmatpush1.msra.mxu0 %v1253
    %1301 = vmatprep.subr.mxu0 0.0
    %1302 = vmatpush1.msra.mxu0 %v1258
    %1303 = vmatprep.subr.mxu0 0.0
    %1304 = vmatpush1.msra.mxu0 %v1261
    %1305 = vmatprep.subr.mxu0 0.0
    %1306 = vmatpush1.msra.mxu0 %v1266
    %1307 = vmatprep.subr.mxu0 0.0
    %1308 = vmatpush1.msra.mxu0 %v1269
    %1309 = vmatprep.subr.mxu0 0.0
    %1310 = vmatpush1.msra.mxu0 %v1274
    %1311 = vmatprep.subr.mxu0 0.0
    %1312 = vmatpush1.msra.mxu0 %v1277
    %1313 = vmatprep.subr.mxu0 0.0
    %1314 = vmatpush1.msra.mxu0 0.0
    %1315 = vmatprep.subr.mxu0 0.0
    %1316 = vmatpush1.msra.mxu0 0.0
    %1317 = vmatprep.subr.mxu0 0.0
    %1318 = vmatpush1.msra.mxu0 0.0
    %1319 = vmatprep.subr.mxu0 0.0
    %1320 = vmatpush1.msra.mxu0 0.0
    %1321 = vmatprep.subr.mxu0 0.0
    %1322 = vmatpush1.msra.mxu0 0.0
    %1323 = vmatprep.subr.mxu0 0.0
    %1324 = vmatpush1.msra.mxu0 0.0
    %1325 = vmatprep.subr.mxu0 0.0
    %1326 = vmatpush1.msra.mxu0 0.0
    %1327 = vmatprep.subr.mxu0 0.0
    %1328 = vmatpush1.msra.mxu0 0.0
    %1329 = vmatprep.subr.mxu0 0.0
    %1330 = vmatpush1.msra.mxu0 0.0
    %1331 = vmatprep.subr.mxu0 0.0
    %1332 = vmatpush1.msra.mxu0 0.0
    %1333 = vmatprep.subr.mxu0 0.0
    %1334 = vmatpush1.msra.mxu0 0.0
    %1335 = vmatprep.subr.mxu0 0.0
    %1336 = vmatpush1.msra.mxu0 0.0
    %1337 = vmatprep.subr.mxu0 0.0
    %1338 = vmatpush1.msra.mxu0 0.0
    %1339 = vmatprep.subr.mxu0 0.0
    %1340 = vmatpush1.msra.mxu0 0.0
    %1341 = vmatprep.subr.mxu0 0.0
    %1342 = vmatpush1.msra.mxu0 0.0
    %1343 = vmatprep.subr.mxu0 0.0
    %1344 = vmatpush1.msra.mxu0 0.0
    %1345 = vmatprep.mubr.f32.mxu0 0.0
    %1346 = vmatmul.mubr.f32.gmra.mrb[0].mxu0 %v1280
    %v1347 = vpop.f32.mrb[0].mxu0
    %v1348 = vadd.f32 0.0, %v1347
    %v1349 = vpop.f32.mrb[0].mxu0
    %1350 = vdwg.mxu0
    %v1351 = vld [vmem:[#allocation13] sm:$0xff]
    %v1352 = vld [vmem:[#allocation13 + $0x8] sm:$0xff]
    %v1353 = vld [vmem:[#allocation13 + $0x10] sm:$0xff]
    %v1354 = vld [vmem:[#allocation13 + $0x18] sm:$0xff]
    %v1355 = vld [vmem:[#allocation13 + $0x20] sm:$0xff]
    %v1356 = vld [vmem:[#allocation13 + $0x28] sm:$0xff]
    %v1357 = vld [vmem:[#allocation13 + $0x30] sm:$0xff]
    %v1358 = vld [vmem:[#allocation13 + $0x38] sm:$0xff]
    %v1359 = vld [vmem:[#allocation13 + $0x40] sm:$0xff]
    %v1360 = vld [vmem:[#allocation13 + $0x48] sm:$0xff]
    %v1361 = vld [vmem:[#allocation13 + $0x50] sm:$0xff]
    %v1362 = vld [vmem:[#allocation13 + $0x58] sm:$0xff]
    %v1363 = vld [vmem:[#allocation13 + $0x60] sm:$0xff]
    %v1364 = vld [vmem:[#allocation13 + $0x68] sm:$0xff]
    %v1365 = vld [vmem:[#allocation13 + $0x70] sm:$0xff]
    %v1366 = vld [vmem:[#allocation13 + $0x78] sm:$0xff]
    %v1367 = vld [vmem:[%s10] sm:$0x1]
    %v1369 = vlaneseq
    %v1370 = vshrl.u32 %v1369, 7
    %v1371 = vsub.s32 0, %v1370
    %v1372 = vrot.slane %v1367, %v1371
    %1374 = vmatprep.subr.mxu0 0.0
    %1375 = vmatpush1.msra.mxu0 %v1351
    %1376 = vmatprep.subr.mxu0 0.0
    %1377 = vmatpush1.msra.mxu0 %v1352
    %1378 = vmatprep.subr.mxu0 0.0
    %1379 = vmatpush1.msra.mxu0 %v1353
    %1380 = vmatprep.subr.mxu0 0.0
    %1381 = vmatpush1.msra.mxu0 %v1354
    %1382 = vmatprep.subr.mxu0 0.0
    %1383 = vmatpush1.msra.mxu0 %v1355
    %1384 = vmatprep.subr.mxu0 0.0
    %1385 = vmatpush1.msra.mxu0 %v1356
    %1386 = vmatprep.subr.mxu0 0.0
    %1387 = vmatpush1.msra.mxu0 %v1357
    %1388 = vmatprep.subr.mxu0 0.0
    %1389 = vmatpush1.msra.mxu0 %v1358
    %1390 = vmatprep.subr.mxu0 0.0
    %1391 = vmatpush1.msra.mxu0 %v1359
    %1392 = vmatprep.subr.mxu0 0.0
    %1393 = vmatpush1.msra.mxu0 %v1360
    %1394 = vmatprep.subr.mxu0 0.0
    %1395 = vmatpush1.msra.mxu0 %v1361
    %1396 = vmatprep.subr.mxu0 0.0
    %1397 = vmatpush1.msra.mxu0 %v1362
    %1398 = vmatprep.subr.mxu0 0.0
    %1399 = vmatpush1.msra.mxu0 %v1363
    %1400 = vmatprep.subr.mxu0 0.0
    %1401 = vmatpush1.msra.mxu0 %v1364
    %1402 = vmatprep.subr.mxu0 0.0
    %1403 = vmatpush1.msra.mxu0 %v1365
    %1404 = vmatprep.subr.mxu0 0.0
    %1405 = vmatpush1.msra.mxu0 %v1366
    %1406 = vmatprep.subr.mxu0 0.0
    %1407 = vmatpush1.msra.mxu0 0.0
    %1408 = vmatprep.subr.mxu0 0.0
    %1409 = vmatpush1.msra.mxu0 0.0
    %1410 = vmatprep.subr.mxu0 0.0
    %1411 = vmatpush1.msra.mxu0 0.0
    %1412 = vmatprep.subr.mxu0 0.0
    %1413 = vmatpush1.msra.mxu0 0.0
    %1414 = vmatprep.subr.mxu0 0.0
    %1415 = vmatpush1.msra.mxu0 0.0
    %1416 = vmatprep.subr.mxu0 0.0
    %1417 = vmatpush1.msra.mxu0 0.0
    %1418 = vmatprep.subr.mxu0 0.0
    %1419 = vmatpush1.msra.mxu0 0.0
    %1420 = vmatprep.subr.mxu0 0.0
    %1421 = vmatpush1.msra.mxu0 0.0
    %1422 = vmatprep.subr.mxu0 0.0
    %1423 = vmatpush1.msra.mxu0 0.0
    %1424 = vmatprep.subr.mxu0 0.0
    %1425 = vmatpush1.msra.mxu0 0.0
    %1426 = vmatprep.subr.mxu0 0.0
    %1427 = vmatpush1.msra.mxu0 0.0
    %1428 = vmatprep.subr.mxu0 0.0
    %1429 = vmatpush1.msra.mxu0 0.0
    %1430 = vmatprep.subr.mxu0 0.0
    %1431 = vmatpush1.msra.mxu0 0.0
    %1432 = vmatprep.subr.mxu0 0.0
    %1433 = vmatpush1.msra.mxu0 0.0
    %1434 = vmatprep.subr.mxu0 0.0
    %1435 = vmatpush1.msra.mxu0 0.0
    %1436 = vmatprep.subr.mxu0 0.0
    %1437 = vmatpush1.msra.mxu0 0.0
    %1438 = vmatprep.mubr.f32.mxu0 0.0
    %1439 = vmatmul.mubr.f32.gmra.mrb[0].mxu0 %v1348
    %v1440 = vpop.f32.mrb[0].mxu0
    %v1441 = vadd.f32 %v1372, %v1440
    %v1442 = vpop.f32.mrb[0].mxu0
    %1443 = vdwg.mxu0
    %1444 = vst [vmem:[#allocation14] sm:$0xff] %v1441
    // Predicated region
    $region74: #{tpu_custom_call.1} parent=1 // pred_check
      _
    $region75: #{tpu_custom_call.1} parent=1 // pred_check_branch
      %1446 = sbr.rel (0) target = $region77
    $region76: #{tpu_custom_call.1} parent=1 // pred_region
      %s1448 = ssub.s32 128, 128
      %1449 = vsyncadd [#allocation4], %s1448
      %s1451 = sshll.u32 [#allocation14], 4
      %s1452 = int_to_ptr.vmem [resolvable:$true] %s1451
      %1454 = dma.vmem_to_hbm [thread:$0]  %s1452, 128, %s11, [#allocation4]
    $region77: #{tpu_custom_call.1} parent=1 // pred_fallthru
      _
    // Predicated region
    $region78: #{tpu_custom_call.1} parent=1 // pred_check
      _
    $region79: #{tpu_custom_call.1} parent=1 // pred_check_branch
      %1456 = sbr.rel (0) target = $region81
    $region80: #{tpu_custom_call.1} parent=1 // pred_region
      %1457 = dma.done [#allocation4], 128
    $region81: #{tpu_custom_call.1} parent=1 // pred_fallthru
      _
    %1458 = vsyncpa [#allocation3], 1
    %1459 = vsyncpa [#allocation6], 1
    %1460 = vsyncpa [#allocation9], 1
    %1461 = vsyncpa [#allocation12], 1
    %1462 = vsyncpa [#allocation4], 1

</llo_original>
